<compile_context>
chip_gen: v7x
topology: tpu7x:2x2x1
jax: 0.10.0
libtpu: 0.0.40
codegen_flags: <defaults>
</compile_context>

<pallas_src>
import jax
import jax.numpy as jnp
from jax.experimental import pallas as pl
from jax.experimental.pallas import tpu as pltpu
from functools import partial


def _mha_kernel(q_ref, k_ref, wq_ref, wkv_ref, o_ref, *,
                num_heads, key_dim, matmul_dtype):
    # q_ref: [N, T_q, Dq], k_ref: [N, T_k, Dk]
    # wq_ref: [Dq, U], wkv_ref: [Dk, 2U] (W_key || W_value), o_ref: [N, T_q, U]
    N, T_q, Dq = q_ref.shape
    _, T_k, Dk = k_ref.shape
    U = wq_ref.shape[1]
    ss = U // num_heads
    inv_scale = 1.0 / (key_dim ** 0.5)

    # ---- Projections: flatten batch so each is one larger MXU matmul. ----
    q2 = q_ref[...].reshape(N * T_q, Dq).astype(matmul_dtype)
    k2 = k_ref[...].reshape(N * T_k, Dk).astype(matmul_dtype)

    Q = jnp.dot(q2, wq_ref[...].astype(matmul_dtype),
                preferred_element_type=jnp.float32)            # [N*T_q, U]
    KV = jnp.dot(k2, wkv_ref[...].astype(matmul_dtype),
                 preferred_element_type=jnp.float32)           # [N*T_k, 2U]

    Q3 = Q.reshape(N, T_q, U)
    K3 = KV[:, :U].reshape(N, T_k, U)
    V3 = KV[:, U:].reshape(N, T_k, U)

    # ---- Head split: [N, T, U] -> [H*N, T, ss] (head-major batch axis). ----
    def split_heads(x, T):
        parts = [x[:, :, h * ss:(h + 1) * ss] for h in range(num_heads)]
        return jnp.stack(parts, axis=0).reshape(num_heads * N, T, ss)

    Qh = split_heads(Q3, T_q).astype(matmul_dtype)             # [H*N, T_q, ss]
    Kh = split_heads(K3, T_k).astype(matmul_dtype)             # [H*N, T_k, ss]
    Vh = split_heads(V3, T_k).astype(matmul_dtype)             # [H*N, T_k, ss]

    # ---- Batched attention: contract last dims directly (no explicit K^T). ----
    s = jnp.einsum('bqd,bkd->bqk', Qh, Kh,
                   preferred_element_type=jnp.float32) * inv_scale  # [H*N, T_q, T_k]

    # Numerically-stable softmax over the key axis (batched reductions).
    s = s - jnp.max(s, axis=-1, keepdims=True)
    p = jnp.exp(s)
    denom = jnp.sum(p, axis=-1, keepdims=True)
    inv = pl.reciprocal(denom, approx=True)       # EUP vrcp (free slot)
    inv = inv * (2.0 - denom * inv)               # one Newton step -> near-exact
    p = p * inv

    out = jnp.einsum('bqk,bkd->bqd', p.astype(matmul_dtype), Vh,
                     preferred_element_type=jnp.float32)       # [H*N, T_q, ss]

    # ---- Concat heads back into the lane dim; single lane-dense store. ----
    out4 = out.reshape(num_heads, N, T_q, ss)
    out_cat = jnp.concatenate([out4[h] for h in range(num_heads)], axis=-1)  # [N, T_q, U]
    o_ref[...] = out_cat.astype(o_ref.dtype)


def multi_head_attention(query, key, w_query, w_key, w_value, *,
                         num_heads, key_dim, matmul_dtype=jnp.float32):
    N, T_q, Dq = query.shape
    _, T_k, Dk = key.shape
    num_units = w_query.shape[1]
    assert num_units % num_heads == 0

    # Fuse the K/V projection weights: one [Dk, 2U] matmul inside the kernel.
    w_kv = jnp.concatenate([w_key, w_value], axis=1)

    kernel = partial(_mha_kernel, num_heads=num_heads, key_dim=key_dim,
                     matmul_dtype=matmul_dtype)

    # Whole problem fits in a few KB of VMEM -> single invocation, no grid.
    vmem = lambda: pl.BlockSpec(memory_space=pltpu.MemorySpace.VMEM)
    return pl.pallas_call(
        kernel,
        out_shape=jax.ShapeDtypeStruct((N, T_q, num_units), jnp.float32),
        in_specs=[vmem(), vmem(), vmem(), vmem()],
        out_specs=vmem(),
    )(query, key, w_query, w_kv)
    # TODO(synk): for very long T_k (large reference-encoder sequences) tile T_k
    # with an online-softmax accumulator instead of materializing [T_q, T_k];
    # size tiles against 64 MiB VMEM on v7x.


def _reference(query, key, w_query, w_key, w_value, *, num_heads, key_dim):
    # Pure-JAX mirror of the PyTorch forward, for correctness checking.
    Q = query @ w_query
    K = key @ w_key
    V = key @ w_value
    ss = Q.shape[-1] // num_heads

    def split_heads(x):  # [N,T,U] -> [h,N,T,ss]
        return jnp.stack(jnp.split(x, num_heads, axis=2), axis=0)

    Qh, Kh, Vh = split_heads(Q), split_heads(K), split_heads(V)
    scores = jnp.einsum("hnqd,hnkd->hnqk", Qh, Kh) / (key_dim ** 0.5)
    scores = jax.nn.softmax(scores, axis=3)
    out = jnp.einsum("hnqk,hnkd->hnqd", scores, Vh)                      # [h,N,T_q,ss]
    out = jnp.concatenate(jnp.split(out, num_heads, axis=0), axis=3)[0]  # [N,T_q,U]
    return out


if __name__ == "__main__":
    # Module hyperparameters (small, consistent with GST usage).
    query_dim = 32
    key_dim = 16
    num_units = 32
    num_heads = 4

    N, T_q, T_k = 2, 8, 8

    root = jax.random.PRNGKey(0)
    k_q, k_k, k_wq, k_wk, k_wv = jax.random.split(root, 5)

    query = jax.random.normal(k_q, (N, T_q, query_dim), dtype=jnp.float32)
    key = jax.random.normal(k_k, (N, T_k, key_dim), dtype=jnp.float32)

    # Deterministic synthetic weights (stored as [in, out]).
    w_query = jax.random.normal(k_wq, (query_dim, num_units), dtype=jnp.float32) * 0.1
    w_key = jax.random.normal(k_wk, (key_dim, num_units), dtype=jnp.float32) * 0.1
    w_value = jax.random.normal(k_wv, (key_dim, num_units), dtype=jnp.float32) * 0.1

    out = multi_head_attention(query, key, w_query, w_key, w_value,
                               num_heads=num_heads, key_dim=key_dim)
    out = jax.block_until_ready(out)

    ref = _reference(query, key, w_query, w_key, w_value,
                     num_heads=num_heads, key_dim=key_dim)

    assert out.shape == (N, T_q, num_units), out.shape
    max_err = float(jnp.max(jnp.abs(out - ref)))
    assert jnp.allclose(out, ref, atol=1e-4, rtol=1e-4), max_err
    print("KERNEL_OK")
</pallas_src>

<mosaic_0001>
module attributes {stable_mosaic.version = 11 : i64} {
  func.func @_mha_kernel(%arg0: memref<2x8x32xf32, #tpu.memory_space<vmem>>, %arg1: memref<2x8x16xf32, #tpu.memory_space<vmem>>, %arg2: memref<32x32xf32, #tpu.memory_space<vmem>>, %arg3: memref<16x64xf32, #tpu.memory_space<vmem>>, %arg4: memref<2x8x32xf32, #tpu.memory_space<vmem>>) attributes {dimension_semantics = [], scalar_prefetch = 0 : i64, scratch_operands = 0 : i64, tpu.core_type = #tpu.core_type<tc>} {
    %c0 = arith.constant 0 : index
    %c0_0 = arith.constant 0 : index
    %c0_1 = arith.constant 0 : index
    %0 = vector.load %arg0[%c0, %c0_0, %c0_1] : memref<2x8x32xf32, #tpu.memory_space<vmem>>, vector<2x8x32xf32>
    %1 = vector.shape_cast %0 : vector<2x8x32xf32> to vector<16x32xf32>
    %c0_2 = arith.constant 0 : index
    %c0_3 = arith.constant 0 : index
    %c0_4 = arith.constant 0 : index
    %2 = vector.load %arg1[%c0_2, %c0_3, %c0_4] : memref<2x8x16xf32, #tpu.memory_space<vmem>>, vector<2x8x16xf32>
    %3 = vector.shape_cast %2 : vector<2x8x16xf32> to vector<16x16xf32>
    %c0_5 = arith.constant 0 : index
    %c0_6 = arith.constant 0 : index
    %4 = vector.load %arg2[%c0_5, %c0_6] : memref<32x32xf32, #tpu.memory_space<vmem>>, vector<32x32xf32>
    %cst = arith.constant dense<0.000000e+00> : vector<16x32xf32>
    %5 = tpu.matmul %1, %4, %cst {dimension_numbers = #tpu.dot_dimension_numbers<[1], [0], [0], [1], [0, 0, 1, 1], [], []>} : vector<16x32xf32>, vector<32x32xf32>, vector<16x32xf32> -> vector<16x32xf32>
    %c0_7 = arith.constant 0 : index
    %c0_8 = arith.constant 0 : index
    %6 = vector.load %arg3[%c0_7, %c0_8] : memref<16x64xf32, #tpu.memory_space<vmem>>, vector<16x64xf32>
    %cst_9 = arith.constant dense<0.000000e+00> : vector<16x64xf32>
    %7 = tpu.matmul %3, %6, %cst_9 {dimension_numbers = #tpu.dot_dimension_numbers<[1], [0], [0], [1], [0, 0, 1, 1], [], []>} : vector<16x16xf32>, vector<16x64xf32>, vector<16x64xf32> -> vector<16x64xf32>
    %8 = vector.shape_cast %5 : vector<16x32xf32> to vector<2x8x32xf32>
    %9 = vector.extract_strided_slice %7 {offsets = [0, 0], sizes = [16, 32], strides = [1, 1]} : vector<16x64xf32> to vector<16x32xf32>
    %10 = vector.shape_cast %9 : vector<16x32xf32> to vector<2x8x32xf32>
    %11 = vector.extract_strided_slice %7 {offsets = [0, 32], sizes = [16, 32], strides = [1, 1]} : vector<16x64xf32> to vector<16x32xf32>
    %12 = vector.shape_cast %11 : vector<16x32xf32> to vector<2x8x32xf32>
    %13 = vector.extract_strided_slice %8 {offsets = [0, 0, 0], sizes = [2, 8, 8], strides = [1, 1, 1]} : vector<2x8x32xf32> to vector<2x8x8xf32>
    %14 = vector.extract_strided_slice %8 {offsets = [0, 0, 8], sizes = [2, 8, 8], strides = [1, 1, 1]} : vector<2x8x32xf32> to vector<2x8x8xf32>
    %15 = vector.extract_strided_slice %8 {offsets = [0, 0, 16], sizes = [2, 8, 8], strides = [1, 1, 1]} : vector<2x8x32xf32> to vector<2x8x8xf32>
    %16 = vector.extract_strided_slice %8 {offsets = [0, 0, 24], sizes = [2, 8, 8], strides = [1, 1, 1]} : vector<2x8x32xf32> to vector<2x8x8xf32>
    %17 = vector.shape_cast %13 : vector<2x8x8xf32> to vector<1x2x8x8xf32>
    %18 = vector.shape_cast %14 : vector<2x8x8xf32> to vector<1x2x8x8xf32>
    %19 = vector.shape_cast %15 : vector<2x8x8xf32> to vector<1x2x8x8xf32>
    %20 = vector.shape_cast %16 : vector<2x8x8xf32> to vector<1x2x8x8xf32>
    %21 = tpu.concatenate %17, %18, %19, %20 in 0 : vector<1x2x8x8xf32>, vector<1x2x8x8xf32>, vector<1x2x8x8xf32>, vector<1x2x8x8xf32> -> vector<4x2x8x8xf32>
    %22 = vector.shape_cast %21 : vector<4x2x8x8xf32> to vector<8x8x8xf32>
    %23 = vector.extract_strided_slice %10 {offsets = [0, 0, 0], sizes = [2, 8, 8], strides = [1, 1, 1]} : vector<2x8x32xf32> to vector<2x8x8xf32>
    %24 = vector.extract_strided_slice %10 {offsets = [0, 0, 8], sizes = [2, 8, 8], strides = [1, 1, 1]} : vector<2x8x32xf32> to vector<2x8x8xf32>
    %25 = vector.extract_strided_slice %10 {offsets = [0, 0, 16], sizes = [2, 8, 8], strides = [1, 1, 1]} : vector<2x8x32xf32> to vector<2x8x8xf32>
    %26 = vector.extract_strided_slice %10 {offsets = [0, 0, 24], sizes = [2, 8, 8], strides = [1, 1, 1]} : vector<2x8x32xf32> to vector<2x8x8xf32>
    %27 = vector.shape_cast %23 : vector<2x8x8xf32> to vector<1x2x8x8xf32>
    %28 = vector.shape_cast %24 : vector<2x8x8xf32> to vector<1x2x8x8xf32>
    %29 = vector.shape_cast %25 : vector<2x8x8xf32> to vector<1x2x8x8xf32>
    %30 = vector.shape_cast %26 : vector<2x8x8xf32> to vector<1x2x8x8xf32>
    %31 = tpu.concatenate %27, %28, %29, %30 in 0 : vector<1x2x8x8xf32>, vector<1x2x8x8xf32>, vector<1x2x8x8xf32>, vector<1x2x8x8xf32> -> vector<4x2x8x8xf32>
    %32 = vector.shape_cast %31 : vector<4x2x8x8xf32> to vector<8x8x8xf32>
    %33 = vector.extract_strided_slice %12 {offsets = [0, 0, 0], sizes = [2, 8, 8], strides = [1, 1, 1]} : vector<2x8x32xf32> to vector<2x8x8xf32>
    %34 = vector.extract_strided_slice %12 {offsets = [0, 0, 8], sizes = [2, 8, 8], strides = [1, 1, 1]} : vector<2x8x32xf32> to vector<2x8x8xf32>
    %35 = vector.extract_strided_slice %12 {offsets = [0, 0, 16], sizes = [2, 8, 8], strides = [1, 1, 1]} : vector<2x8x32xf32> to vector<2x8x8xf32>
    %36 = vector.extract_strided_slice %12 {offsets = [0, 0, 24], sizes = [2, 8, 8], strides = [1, 1, 1]} : vector<2x8x32xf32> to vector<2x8x8xf32>
    %37 = vector.shape_cast %33 : vector<2x8x8xf32> to vector<1x2x8x8xf32>
    %38 = vector.shape_cast %34 : vector<2x8x8xf32> to vector<1x2x8x8xf32>
    %39 = vector.shape_cast %35 : vector<2x8x8xf32> to vector<1x2x8x8xf32>
    %40 = vector.shape_cast %36 : vector<2x8x8xf32> to vector<1x2x8x8xf32>
    %41 = tpu.concatenate %37, %38, %39, %40 in 0 : vector<1x2x8x8xf32>, vector<1x2x8x8xf32>, vector<1x2x8x8xf32>, vector<1x2x8x8xf32> -> vector<4x2x8x8xf32>
    %42 = vector.shape_cast %41 : vector<4x2x8x8xf32> to vector<8x8x8xf32>
    "tpu.trace_start"() <{level = 10 : i32, message = "bqd,bkd->bqk"}> : () -> ()
    %cst_10 = arith.constant dense<0.000000e+00> : vector<8x8x8xf32>
    %43 = tpu.matmul %22, %32, %cst_10 {dimension_numbers = #tpu.dot_dimension_numbers<[2], [2], [1], [1], [0, 0, 0, 1, 1, 1], [0], [0]>} : vector<8x8x8xf32>, vector<8x8x8xf32>, vector<8x8x8xf32> -> vector<8x8x8xf32>
    "tpu.trace_stop"() : () -> ()
    %cst_11 = arith.constant 2.500000e-01 : f32
    %44 = vector.broadcast %cst_11 : f32 to vector<8x8x8xf32>
    %45 = arith.mulf %43, %44 : vector<8x8x8xf32>
    %cst_12 = arith.constant dense<0xFF800000> : vector<8x8xf32>
    %46 = vector.multi_reduction <maximumf>, %45, %cst_12 [2] : vector<8x8x8xf32> to vector<8x8xf32>
    %47 = vector.shape_cast %46 : vector<8x8xf32> to vector<8x8x1xf32>
    %48 = vector.broadcast %47 : vector<8x8x1xf32> to vector<8x8x8xf32>
    %49 = arith.subf %45, %48 : vector<8x8x8xf32>
    %50 = math.exp %49 : vector<8x8x8xf32>
    %cst_13 = arith.constant dense<0.000000e+00> : vector<8x8xf32>
    %51 = vector.multi_reduction <add>, %50, %cst_13 [2] : vector<8x8x8xf32> to vector<8x8xf32>
    %52 = vector.shape_cast %51 : vector<8x8xf32> to vector<8x8x1xf32>
    %53 = tpu.reciprocal %52 {approx = true} : vector<8x8x1xf32> -> vector<8x8x1xf32>
    %54 = arith.mulf %52, %53 : vector<8x8x1xf32>
    %cst_14 = arith.constant 2.000000e+00 : f32
    %55 = vector.broadcast %cst_14 : f32 to vector<8x8x1xf32>
    %56 = arith.subf %55, %54 : vector<8x8x1xf32>
    %57 = arith.mulf %53, %56 : vector<8x8x1xf32>
    %58 = vector.broadcast %57 : vector<8x8x1xf32> to vector<8x8x8xf32>
    %59 = arith.mulf %50, %58 : vector<8x8x8xf32>
    "tpu.trace_start"() <{level = 10 : i32, message = "bqk,bkd->bqd"}> : () -> ()
    %cst_15 = arith.constant dense<0.000000e+00> : vector<8x8x8xf32>
    %60 = tpu.matmul %59, %42, %cst_15 {dimension_numbers = #tpu.dot_dimension_numbers<[2], [1], [1], [2], [0, 0, 0, 1, 1, 2], [0], [0]>} : vector<8x8x8xf32>, vector<8x8x8xf32>, vector<8x8x8xf32> -> vector<8x8x8xf32>
    "tpu.trace_stop"() : () -> ()
    %61 = vector.shape_cast %60 : vector<8x8x8xf32> to vector<4x2x8x8xf32>
    %62 = vector.extract_strided_slice %61 {offsets = [0, 0, 0, 0], sizes = [1, 2, 8, 8], strides = [1, 1, 1, 1]} : vector<4x2x8x8xf32> to vector<1x2x8x8xf32>
    %63 = vector.shape_cast %62 : vector<1x2x8x8xf32> to vector<2x8x8xf32>
    %64 = vector.extract_strided_slice %61 {offsets = [1, 0, 0, 0], sizes = [1, 2, 8, 8], strides = [1, 1, 1, 1]} : vector<4x2x8x8xf32> to vector<1x2x8x8xf32>
    %65 = vector.shape_cast %64 : vector<1x2x8x8xf32> to vector<2x8x8xf32>
    %66 = vector.extract_strided_slice %61 {offsets = [2, 0, 0, 0], sizes = [1, 2, 8, 8], strides = [1, 1, 1, 1]} : vector<4x2x8x8xf32> to vector<1x2x8x8xf32>
    %67 = vector.shape_cast %66 : vector<1x2x8x8xf32> to vector<2x8x8xf32>
    %68 = vector.extract_strided_slice %61 {offsets = [3, 0, 0, 0], sizes = [1, 2, 8, 8], strides = [1, 1, 1, 1]} : vector<4x2x8x8xf32> to vector<1x2x8x8xf32>
    %69 = vector.shape_cast %68 : vector<1x2x8x8xf32> to vector<2x8x8xf32>
    %70 = tpu.concatenate %63, %65, %67, %69 in 2 : vector<2x8x8xf32>, vector<2x8x8xf32>, vector<2x8x8xf32>, vector<2x8x8xf32> -> vector<2x8x32xf32>
    %c0_16 = arith.constant 0 : index
    %c0_17 = arith.constant 0 : index
    %c0_18 = arith.constant 0 : index
    %71 = vector.load %arg4[%c0_16, %c0_17, %c0_18] : memref<2x8x32xf32, #tpu.memory_space<vmem>>, vector<2x8x32xf32>
    tpu.vector_store %arg4[%c0_16, %c0_17, %c0_18], %70 {strides = array<i32>} : memref<2x8x32xf32, #tpu.memory_space<vmem>>, vector<2x8x32xf32>,
    return
  }
}

</mosaic_0001>

<llo_original>
// kernel: tpu_custom_call.1
$region0: #{tpu_custom_call.1}
  #allocation0 [shape = 'u32[]', space=smem, size = 0x4, offset = 0x4, fixed_abs, tag = 'smem constant byte address 0x4 - core index']
  #allocation1 [shape = 'u32[144,128]{1,0:T(1,128)}', space=vmem, size = 0x12000, scoped, tag = 'internal scratch']
  %s0 = inlined_call_operand.hbm [shape: f32[2,8,32], index: 0, kind: input, shape index: {}]
  %s1 = inlined_call_operand.hbm [shape: f32[2,8,16], index: 1, kind: input, shape index: {}]
  %s2 = inlined_call_operand.hbm [shape: f32[32,32], index: 2, kind: input, shape index: {}]
  %s3 = inlined_call_operand.hbm [shape: f32[16,64], index: 3, kind: input, shape index: {}]
  %s4 = inlined_call_operand.hbm [shape: f32[2,8,32], index: 4, kind: output, shape index: {}]
  %s5 = sld [smem:[#allocation0]]
  $region42: #{tpu_custom_call.1} parent=0
    _
  %s7 = ssub.s32 1, %s5
  %s8 = scalar_select 0, %s7, %s5
  $region1: #{tpu_custom_call.1} parent=0
    #allocation2 [shape = 'u8[8192]{0}', space=vmem, size = 0x2000, scoped, tag = 'input window, operand 0, single buffered']
    #allocation3 [shape = 's32[1]{0}', space=sflag, size = 0x4, scoped, tag = 'scoped memory for tpu_custom_call.1']
    #allocation4 [shape = 's32[1]{0}', space=sflag, size = 0x4, scoped, tag = 'scoped memory for tpu_custom_call.1']
    #allocation5 [shape = 'u8[8192]{0}', space=vmem, size = 0x2000, scoped, tag = 'input window, operand 1, single buffered']
    #allocation6 [shape = 's32[1]{0}', space=sflag, size = 0x4, scoped, tag = 'scoped memory for tpu_custom_call.1']
    #allocation7 [shape = 'u8[16384]{0}', space=vmem, size = 0x4000, scoped, tag = 'input window, operand 2, single buffered']
    #allocation8 [shape = 'u8[8192]{0}', space=vmem, size = 0x2000, scoped, tag = 'input window, operand 3, single buffered']
    #allocation9 [shape = 's32[1]{0}', space=sflag, size = 0x4, scoped, tag = 'scoped memory for tpu_custom_call.1']
    #allocation10 [shape = 'u8[8192]{0}', space=vmem, size = 0x2000, scoped, tag = 'output window, operand 0, single buffered']
    %9 = vsyncpa [#allocation3], 0
    %10 = vsyncpa [#allocation6], 0
    %11 = vsyncpa [#allocation9], 0
    %12 = vsyncpa [#allocation4], 0
    // Predicated region
    $region2: #{tpu_custom_call.1} parent=1 // pred_check
      _
    $region3: #{tpu_custom_call.1} parent=1 // pred_check_branch
      %14 = sbr.rel (0) target = $region5
    $region4: #{tpu_custom_call.1} parent=1 // pred_region
      %s16 = ssub.s32 256, 256
      %17 = vsyncadd [#allocation3], %s16
      %s18 = sshll.u32 [#allocation2], 4
      %s19 = int_to_ptr.vmem [resolvable:$true] %s18
      %24 = dma.hbm_to_vmem [thread:$0]  %s0, 256, %s19, [#allocation3], 128, 128, 8
    $region5: #{tpu_custom_call.1} parent=1 // pred_fallthru
      _
    // Predicated region
    $region6: #{tpu_custom_call.1} parent=1 // pred_check
      _
    $region7: #{tpu_custom_call.1} parent=1 // pred_check_branch
      %26 = sbr.rel (0) target = $region9
    $region8: #{tpu_custom_call.1} parent=1 // pred_region
      %s28 = ssub.s32 256, 256
      %29 = vsyncadd [#allocation6], %s28
      %s30 = sshll.u32 [#allocation5], 4
      %s31 = int_to_ptr.vmem [resolvable:$true] %s30
      %36 = dma.hbm_to_vmem [thread:$0]  %s1, 256, %s31, [#allocation6], 128, 128, 8
    $region9: #{tpu_custom_call.1} parent=1 // pred_fallthru
      _
    // Predicated region
    $region10: #{tpu_custom_call.1} parent=1 // pred_check
      _
    $region11: #{tpu_custom_call.1} parent=1 // pred_check_branch
      %38 = sbr.rel (0) target = $region13
    $region12: #{tpu_custom_call.1} parent=1 // pred_region
      %s40 = ssub.s32 512, 512
      %41 = vsyncadd [#allocation6], %s40
      %s42 = sshll.u32 [#allocation7], 4
      %s43 = int_to_ptr.vmem [resolvable:$true] %s42
      %48 = dma.hbm_to_vmem [thread:$0]  %s2, 512, %s43, [#allocation6], 128, 128, 8
    $region13: #{tpu_custom_call.1} parent=1 // pred_fallthru
      _
    // Predicated region
    $region14: #{tpu_custom_call.1} parent=1 // pred_check
      _
    $region15: #{tpu_custom_call.1} parent=1 // pred_check_branch
      %50 = sbr.rel (0) target = $region17
    $region16: #{tpu_custom_call.1} parent=1 // pred_region
      %s52 = ssub.s32 256, 256
      %53 = vsyncadd [#allocation9], %s52
      %s54 = sshll.u32 [#allocation8], 4
      %s55 = int_to_ptr.vmem [resolvable:$true] %s54
      %60 = dma.hbm_to_vmem [thread:$0]  %s3, 256, %s55, [#allocation9], 128, 128, 8
    $region17: #{tpu_custom_call.1} parent=1 // pred_fallthru
      _
    // Predicated region
    $region18: #{tpu_custom_call.1} parent=1 // pred_check
      _
    $region19: #{tpu_custom_call.1} parent=1 // pred_check_branch
      %62 = sbr.rel (0) target = $region21
    $region20: #{tpu_custom_call.1} parent=1 // pred_region
      %63 = dma.done [#allocation3], 256
    $region21: #{tpu_custom_call.1} parent=1 // pred_fallthru
      _
    // Predicated region
    $region22: #{tpu_custom_call.1} parent=1 // pred_check
      _
    $region23: #{tpu_custom_call.1} parent=1 // pred_check_branch
      %65 = sbr.rel (0) target = $region25
    $region24: #{tpu_custom_call.1} parent=1 // pred_region
      %66 = dma.done [#allocation6], 256
    $region25: #{tpu_custom_call.1} parent=1 // pred_fallthru
      _
    // Predicated region
    $region26: #{tpu_custom_call.1} parent=1 // pred_check
      _
    $region27: #{tpu_custom_call.1} parent=1 // pred_check_branch
      %68 = sbr.rel (0) target = $region29
    $region28: #{tpu_custom_call.1} parent=1 // pred_region
      %69 = dma.done [#allocation6], 512
    $region29: #{tpu_custom_call.1} parent=1 // pred_fallthru
      _
    // Predicated region
    $region30: #{tpu_custom_call.1} parent=1 // pred_check
      _
    $region31: #{tpu_custom_call.1} parent=1 // pred_check_branch
      %71 = sbr.rel (0) target = $region33
    $region32: #{tpu_custom_call.1} parent=1 // pred_region
      %72 = dma.done [#allocation9], 256
    $region33: #{tpu_custom_call.1} parent=1 // pred_fallthru
      _
    %v73 = vld [vmem:[#allocation2] sm:$0xff]
    %v74 = vld [vmem:[#allocation2 + $0x8] sm:$0xff]
    %v75 = vld [vmem:[#allocation5] sm:$0xff]
    %v76 = vld [vmem:[#allocation5 + $0x8] sm:$0xff]
    %v77 = vld [vmem:[#allocation7] sm:$0xff]
    %v78 = vld [vmem:[#allocation7 + $0x8] sm:$0xff]
    %v79 = vld [vmem:[#allocation7 + $0x10] sm:$0xff]
    %v80 = vld [vmem:[#allocation7 + $0x18] sm:$0xff]
    %vm81 = vcmask 261120
    %v83 = vsel %vm81, %v73, 0
    %v86 = vsel %vm81, %v74, 0
    %88 = vmatprep.subr.mxu0 0.0
    %89 = vmatpush1.msra.mxu0 %v77
    %90 = vmatprep.subr.mxu0 0.0
    %91 = vmatpush1.msra.mxu0 %v78
    %92 = vmatprep.subr.mxu0 0.0
    %93 = vmatpush1.msra.mxu0 %v79
    %94 = vmatprep.subr.mxu0 0.0
    %95 = vmatpush1.msra.mxu0 %v80
    %96 = vmatprep.subr.mxu0 0.0
    %97 = vmatpush1.msra.mxu0 0.0
    %98 = vmatprep.subr.mxu0 0.0
    %99 = vmatpush1.msra.mxu0 0.0
    %100 = vmatprep.subr.mxu0 0.0
    %101 = vmatpush1.msra.mxu0 0.0
    %102 = vmatprep.subr.mxu0 0.0
    %103 = vmatpush1.msra.mxu0 0.0
    %104 = vmatprep.subr.mxu0 0.0
    %105 = vmatpush1.msra.mxu0 0.0
    %106 = vmatprep.subr.mxu0 0.0
    %107 = vmatpush1.msra.mxu0 0.0
    %108 = vmatprep.subr.mxu0 0.0
    %109 = vmatpush1.msra.mxu0 0.0
    %110 = vmatprep.subr.mxu0 0.0
    %111 = vmatpush1.msra.mxu0 0.0
    %112 = vmatprep.subr.mxu0 0.0
    %113 = vmatpush1.msra.mxu0 0.0
    %114 = vmatprep.subr.mxu0 0.0
    %115 = vmatpush1.msra.mxu0 0.0
    %116 = vmatprep.subr.mxu0 0.0
    %117 = vmatpush1.msra.mxu0 0.0
    %118 = vmatprep.subr.mxu0 0.0
    %119 = vmatpush1.msra.mxu0 0.0
    %120 = vmatprep.subr.mxu0 0.0
    %121 = vmatpush1.msra.mxu0 0.0
    %122 = vmatprep.subr.mxu0 0.0
    %123 = vmatpush1.msra.mxu0 0.0
    %124 = vmatprep.subr.mxu0 0.0
    %125 = vmatpush1.msra.mxu0 0.0
    %126 = vmatprep.subr.mxu0 0.0
    %127 = vmatpush1.msra.mxu0 0.0
    %128 = vmatprep.subr.mxu0 0.0
    %129 = vmatpush1.msra.mxu0 0.0
    %130 = vmatprep.subr.mxu0 0.0
    %131 = vmatpush1.msra.mxu0 0.0
    %132 = vmatprep.subr.mxu0 0.0
    %133 = vmatpush1.msra.mxu0 0.0
    %134 = vmatprep.subr.mxu0 0.0
    %135 = vmatpush1.msra.mxu0 0.0
    %136 = vmatprep.subr.mxu0 0.0
    %137 = vmatpush1.msra.mxu0 0.0
    %138 = vmatprep.subr.mxu0 0.0
    %139 = vmatpush1.msra.mxu0 0.0
    %140 = vmatprep.subr.mxu0 0.0
    %141 = vmatpush1.msra.mxu0 0.0
    %142 = vmatprep.subr.mxu0 0.0
    %143 = vmatpush1.msra.mxu0 0.0
    %144 = vmatprep.subr.mxu0 0.0
    %145 = vmatpush1.msra.mxu0 0.0
    %146 = vmatprep.subr.mxu0 0.0
    %147 = vmatpush1.msra.mxu0 0.0
    %148 = vmatprep.subr.mxu0 0.0
    %149 = vmatpush1.msra.mxu0 0.0
    %150 = vmatprep.subr.mxu0 0.0
    %151 = vmatpush1.msra.mxu0 0.0
    %152 = vmatprep.mubr.f32.mxu0 0.0
    %153 = vmatmul.mubr.f32.gmra.mrb[0].mxu0 %v83
    %v154 = vpop.f32.mrb[0].mxu0
    %v155 = vadd.f32 0.0, %v154
    %v156 = vpop.f32.mrb[0].mxu0
    %157 = vmatprep.mubr.f32.mxu0 0.0
    %158 = vmatmul.mubr.f32.gmra.mrb[0].mxu0 %v86
    %v159 = vpop.f32.mrb[0].mxu0
    %v160 = vadd.f32 0.0, %v159
    %v161 = vpop.f32.mrb[0].mxu0
    %162 = vdwg.mxu0
    %v163 = vld [vmem:[#allocation8] sm:$0xff]
    %v164 = vld [vmem:[#allocation8 + $0x8] sm:$0xff]
    %vm165 = vcmask 130048
    %v167 = vsel %vm165, %v75, 0
    %v170 = vsel %vm165, %v76, 0
    %172 = vmatprep.subr.mxu0 0.0
    %173 = vmatpush1.msra.mxu0 %v163
    %174 = vmatprep.subr.mxu0 0.0
    %175 = vmatpush1.msra.mxu0 %v164
    %176 = vmatprep.subr.mxu0 0.0
    %177 = vmatpush1.msra.mxu0 0.0
    %178 = vmatprep.subr.mxu0 0.0
    %179 = vmatpush1.msra.mxu0 0.0
    %180 = vmatprep.subr.mxu0 0.0
    %181 = vmatpush1.msra.mxu0 0.0
    %182 = vmatprep.subr.mxu0 0.0
    %183 = vmatpush1.msra.mxu0 0.0
    %184 = vmatprep.subr.mxu0 0.0
    %185 = vmatpush1.msra.mxu0 0.0
    %186 = vmatprep.subr.mxu0 0.0
    %187 = vmatpush1.msra.mxu0 0.0
    %188 = vmatprep.subr.mxu0 0.0
    %189 = vmatpush1.msra.mxu0 0.0
    %190 = vmatprep.subr.mxu0 0.0
    %191 = vmatpush1.msra.mxu0 0.0
    %192 = vmatprep.subr.mxu0 0.0
    %193 = vmatpush1.msra.mxu0 0.0
    %194 = vmatprep.subr.mxu0 0.0
    %195 = vmatpush1.msra.mxu0 0.0
    %196 = vmatprep.subr.mxu0 0.0
    %197 = vmatpush1.msra.mxu0 0.0
    %198 = vmatprep.subr.mxu0 0.0
    %199 = vmatpush1.msra.mxu0 0.0
    %200 = vmatprep.subr.mxu0 0.0
    %201 = vmatpush1.msra.mxu0 0.0
    %202 = vmatprep.subr.mxu0 0.0
    %203 = vmatpush1.msra.mxu0 0.0
    %204 = vmatprep.subr.mxu0 0.0
    %205 = vmatpush1.msra.mxu0 0.0
    %206 = vmatprep.subr.mxu0 0.0
    %207 = vmatpush1.msra.mxu0 0.0
    %208 = vmatprep.subr.mxu0 0.0
    %209 = vmatpush1.msra.mxu0 0.0
    %210 = vmatprep.subr.mxu0 0.0
    %211 = vmatpush1.msra.mxu0 0.0
    %212 = vmatprep.subr.mxu0 0.0
    %213 = vmatpush1.msra.mxu0 0.0
    %214 = vmatprep.subr.mxu0 0.0
    %215 = vmatpush1.msra.mxu0 0.0
    %216 = vmatprep.subr.mxu0 0.0
    %217 = vmatpush1.msra.mxu0 0.0
    %218 = vmatprep.subr.mxu0 0.0
    %219 = vmatpush1.msra.mxu0 0.0
    %220 = vmatprep.subr.mxu0 0.0
    %221 = vmatpush1.msra.mxu0 0.0
    %222 = vmatprep.subr.mxu0 0.0
    %223 = vmatpush1.msra.mxu0 0.0
    %224 = vmatprep.subr.mxu0 0.0
    %225 = vmatpush1.msra.mxu0 0.0
    %226 = vmatprep.subr.mxu0 0.0
    %227 = vmatpush1.msra.mxu0 0.0
    %228 = vmatprep.subr.mxu0 0.0
    %229 = vmatpush1.msra.mxu0 0.0
    %230 = vmatprep.subr.mxu0 0.0
    %231 = vmatpush1.msra.mxu0 0.0
    %232 = vmatprep.subr.mxu0 0.0
    %233 = vmatpush1.msra.mxu0 0.0
    %234 = vmatprep.subr.mxu0 0.0
    %235 = vmatpush1.msra.mxu0 0.0
    %236 = vmatprep.mubr.f32.mxu0 0.0
    %237 = vmatmul.mubr.f32.gmra.mrb[0].mxu0 %v167
    %v238 = vpop.f32.mrb[0].mxu0
    %v239 = vadd.f32 0.0, %v238
    %v240 = vpop.f32.mrb[0].mxu0
    %241 = vmatprep.mubr.f32.mxu0 0.0
    %242 = vmatmul.mubr.f32.gmra.mrb[0].mxu0 %v170
    %v243 = vpop.f32.mrb[0].mxu0
    %v244 = vadd.f32 0.0, %v243
    %v245 = vpop.f32.mrb[0].mxu0
    %246 = vdwg.mxu0
    %249 = vrot.lane.b32.xlu0 %v155, 120
    %v250 = vpop.permute.xlu0 %249
    %251 = vrot.lane.b32.xlu0 %v160, 120
    %v252 = vpop.permute.xlu0 %251
    %253 = vrot.lane.b32.xlu0 %v155, 112
    %v254 = vpop.permute.xlu0 %253
    %255 = vrot.lane.b32.xlu0 %v160, 112
    %v256 = vpop.permute.xlu0 %255
    %257 = vrot.lane.b32.xlu0 %v155, 104
    %v258 = vpop.permute.xlu0 %257
    %259 = vrot.lane.b32.xlu0 %v160, 104
    %v260 = vpop.permute.xlu0 %259
    %263 = vrot.lane.b32.xlu0 %v239, 120
    %v264 = vpop.permute.xlu0 %263
    %265 = vrot.lane.b32.xlu0 %v244, 120
    %v266 = vpop.permute.xlu0 %265
    %267 = vrot.lane.b32.xlu0 %v239, 112
    %v268 = vpop.permute.xlu0 %267
    %269 = vrot.lane.b32.xlu0 %v244, 112
    %v270 = vpop.permute.xlu0 %269
    %271 = vrot.lane.b32.xlu0 %v239, 104
    %v272 = vpop.permute.xlu0 %271
    %273 = vrot.lane.b32.xlu0 %v244, 104
    %v274 = vpop.permute.xlu0 %273
    %vm275 = vcmask 64512
    %v276 = vsel %vm275, %v155, 0
    %v278 = vsel %vm275, %v239, 0
    %280 = vmatprep.subr.mxu0 0.0
    %281 = vmatpush1.xpose.msra.mxu0 %v278
    %282 = vmatprep.subr.mxu0 0.0
    %283 = vmatpush1.xpose.msra.mxu0 0.0
    %284 = vmatprep.subr.mxu0 0.0
    %285 = vmatpush1.xpose.msra.mxu0 0.0
    %286 = vmatprep.subr.mxu0 0.0
    %287 = vmatpush1.xpose.msra.mxu0 0.0
    %288 = vmatprep.subr.mxu0 0.0
    %289 = vmatpush1.xpose.msra.mxu0 0.0
    %290 = vmatprep.subr.mxu0 0.0
    %291 = vmatpush1.xpose.msra.mxu0 0.0
    %292 = vmatprep.subr.mxu0 0.0
    %293 = vmatpush1.xpose.msra.mxu0 0.0
    %294 = vmatprep.subr.mxu0 0.0
    %295 = vmatpush1.xpose.msra.mxu0 0.0
    %296 = vmatprep.subr.mxu0 0.0
    %297 = vmatpush1.xpose.msra.mxu0 0.0
    %298 = vmatprep.subr.mxu0 0.0
    %299 = vmatpush1.xpose.msra.mxu0 0.0
    %300 = vmatprep.subr.mxu0 0.0
    %301 = vmatpush1.xpose.msra.mxu0 0.0
    %302 = vmatprep.subr.mxu0 0.0
    %303 = vmatpush1.xpose.msra.mxu0 0.0
    %304 = vmatprep.subr.mxu0 0.0
    %305 = vmatpush1.xpose.msra.mxu0 0.0
    %306 = vmatprep.subr.mxu0 0.0
    %307 = vmatpush1.xpose.msra.mxu0 0.0
    %308 = vmatprep.subr.mxu0 0.0
    %309 = vmatpush1.xpose.msra.mxu0 0.0
    %310 = vmatprep.subr.mxu0 0.0
    %311 = vmatpush1.xpose.msra.mxu0 0.0
    %312 = vmatprep.subr.mxu0 0.0
    %313 = vmatpush1.xpose.msra.mxu0 0.0
    %314 = vmatprep.subr.mxu0 0.0
    %315 = vmatpush1.xpose.msra.mxu0 0.0
    %316 = vmatprep.subr.mxu0 0.0
    %317 = vmatpush1.xpose.msra.mxu0 0.0
    %318 = vmatprep.subr.mxu0 0.0
    %319 = vmatpush1.xpose.msra.mxu0 0.0
    %320 = vmatprep.subr.mxu0 0.0
    %321 = vmatpush1.xpose.msra.mxu0 0.0
    %322 = vmatprep.subr.mxu0 0.0
    %323 = vmatpush1.xpose.msra.mxu0 0.0
    %324 = vmatprep.subr.mxu0 0.0
    %325 = vmatpush1.xpose.msra.mxu0 0.0
    %326 = vmatprep.subr.mxu0 0.0
    %327 = vmatpush1.xpose.msra.mxu0 0.0
    %328 = vmatprep.subr.mxu0 0.0
    %329 = vmatpush1.xpose.msra.mxu0 0.0
    %330 = vmatprep.subr.mxu0 0.0
    %331 = vmatpush1.xpose.msra.mxu0 0.0
    %332 = vmatprep.subr.mxu0 0.0
    %333 = vmatpush1.xpose.msra.mxu0 0.0
    %334 = vmatprep.subr.mxu0 0.0
    %335 = vmatpush1.xpose.msra.mxu0 0.0
    %336 = vmatprep.subr.mxu0 0.0
    %337 = vmatpush1.xpose.msra.mxu0 0.0
    %338 = vmatprep.subr.mxu0 0.0
    %339 = vmatpush1.xpose.msra.mxu0 0.0
    %340 = vmatprep.subr.mxu0 0.0
    %341 = vmatpush1.xpose.msra.mxu0 0.0
    %342 = vmatprep.subr.mxu0 0.0
    %343 = vmatpush1.xpose.msra.mxu0 0.0
    %344 = vmatprep.mubr.f32.mxu0 0.0
    %345 = vmatmul.mubr.f32.gmra.mrb[0].mxu0 %v276
    %v346 = vpop.f32.mrb[0].mxu0
    %v347 = vadd.f32 0.0, %v346
    %v348 = vpop.f32.mrb[0].mxu0
    %349 = vdwg.mxu0
    %v350 = vsel %vm275, %v160, 0
    %v352 = vsel %vm275, %v244, 0
    %354 = vmatprep.subr.mxu0 0.0
    %355 = vmatpush1.xpose.msra.mxu0 %v352
    %356 = vmatprep.subr.mxu0 0.0
    %357 = vmatpush1.xpose.msra.mxu0 0.0
    %358 = vmatprep.subr.mxu0 0.0
    %359 = vmatpush1.xpose.msra.mxu0 0.0
    %360 = vmatprep.subr.mxu0 0.0
    %361 = vmatpush1.xpose.msra.mxu0 0.0
    %362 = vmatprep.subr.mxu0 0.0
    %363 = vmatpush1.xpose.msra.mxu0 0.0
    %364 = vmatprep.subr.mxu0 0.0
    %365 = vmatpush1.xpose.msra.mxu0 0.0
    %366 = vmatprep.subr.mxu0 0.0
    %367 = vmatpush1.xpose.msra.mxu0 0.0
    %368 = vmatprep.subr.mxu0 0.0
    %369 = vmatpush1.xpose.msra.mxu0 0.0
    %370 = vmatprep.subr.mxu0 0.0
    %371 = vmatpush1.xpose.msra.mxu0 0.0
    %372 = vmatprep.subr.mxu0 0.0
    %373 = vmatpush1.xpose.msra.mxu0 0.0
    %374 = vmatprep.subr.mxu0 0.0
    %375 = vmatpush1.xpose.msra.mxu0 0.0
    %376 = vmatprep.subr.mxu0 0.0
    %377 = vmatpush1.xpose.msra.mxu0 0.0
    %378 = vmatprep.subr.mxu0 0.0
    %379 = vmatpush1.xpose.msra.mxu0 0.0
    %380 = vmatprep.subr.mxu0 0.0
    %381 = vmatpush1.xpose.msra.mxu0 0.0
    %382 = vmatprep.subr.mxu0 0.0
    %383 = vmatpush1.xpose.msra.mxu0 0.0
    %384 = vmatprep.subr.mxu0 0.0
    %385 = vmatpush1.xpose.msra.mxu0 0.0
    %386 = vmatprep.subr.mxu0 0.0
    %387 = vmatpush1.xpose.msra.mxu0 0.0
    %388 = vmatprep.subr.mxu0 0.0
    %389 = vmatpush1.xpose.msra.mxu0 0.0
    %390 = vmatprep.subr.mxu0 0.0
    %391 = vmatpush1.xpose.msra.mxu0 0.0
    %392 = vmatprep.subr.mxu0 0.0
    %393 = vmatpush1.xpose.msra.mxu0 0.0
    %394 = vmatprep.subr.mxu0 0.0
    %395 = vmatpush1.xpose.msra.mxu0 0.0
    %396 = vmatprep.subr.mxu0 0.0
    %397 = vmatpush1.xpose.msra.mxu0 0.0
    %398 = vmatprep.subr.mxu0 0.0
    %399 = vmatpush1.xpose.msra.mxu0 0.0
    %400 = vmatprep.subr.mxu0 0.0
    %401 = vmatpush1.xpose.msra.mxu0 0.0
    %402 = vmatprep.subr.mxu0 0.0
    %403 = vmatpush1.xpose.msra.mxu0 0.0
    %404 = vmatprep.subr.mxu0 0.0
    %405 = vmatpush1.xpose.msra.mxu0 0.0
    %406 = vmatprep.subr.mxu0 0.0
    %407 = vmatpush1.xpose.msra.mxu0 0.0
    %408 = vmatprep.subr.mxu0 0.0
    %409 = vmatpush1.xpose.msra.mxu0 0.0
    %410 = vmatprep.subr.mxu0 0.0
    %411 = vmatpush1.xpose.msra.mxu0 0.0
    %412 = vmatprep.subr.mxu0 0.0
    %413 = vmatpush1.xpose.msra.mxu0 0.0
    %414 = vmatprep.subr.mxu0 0.0
    %415 = vmatpush1.xpose.msra.mxu0 0.0
    %416 = vmatprep.subr.mxu0 0.0
    %417 = vmatpush1.xpose.msra.mxu0 0.0
    %418 = vmatprep.mubr.f32.mxu0 0.0
    %419 = vmatmul.mubr.f32.gmra.mrb[0].mxu0 %v350
    %v420 = vpop.f32.mrb[0].mxu0
    %v421 = vadd.f32 0.0, %v420
    %v422 = vpop.f32.mrb[0].mxu0
    %423 = vdwg.mxu0
    %v424 = vsel %vm275, %v250, 0
    %v426 = vsel %vm275, %v264, 0
    %428 = vmatprep.subr.mxu0 0.0
    %429 = vmatpush1.xpose.msra.mxu0 %v426
    %430 = vmatprep.subr.mxu0 0.0
    %431 = vmatpush1.xpose.msra.mxu0 0.0
    %432 = vmatprep.subr.mxu0 0.0
    %433 = vmatpush1.xpose.msra.mxu0 0.0
    %434 = vmatprep.subr.mxu0 0.0
    %435 = vmatpush1.xpose.msra.mxu0 0.0
    %436 = vmatprep.subr.mxu0 0.0
    %437 = vmatpush1.xpose.msra.mxu0 0.0
    %438 = vmatprep.subr.mxu0 0.0
    %439 = vmatpush1.xpose.msra.mxu0 0.0
    %440 = vmatprep.subr.mxu0 0.0
    %441 = vmatpush1.xpose.msra.mxu0 0.0
    %442 = vmatprep.subr.mxu0 0.0
    %443 = vmatpush1.xpose.msra.mxu0 0.0
    %444 = vmatprep.subr.mxu0 0.0
    %445 = vmatpush1.xpose.msra.mxu0 0.0
    %446 = vmatprep.subr.mxu0 0.0
    %447 = vmatpush1.xpose.msra.mxu0 0.0
    %448 = vmatprep.subr.mxu0 0.0
    %449 = vmatpush1.xpose.msra.mxu0 0.0
    %450 = vmatprep.subr.mxu0 0.0
    %451 = vmatpush1.xpose.msra.mxu0 0.0
    %452 = vmatprep.subr.mxu0 0.0
    %453 = vmatpush1.xpose.msra.mxu0 0.0
    %454 = vmatprep.subr.mxu0 0.0
    %455 = vmatpush1.xpose.msra.mxu0 0.0
    %456 = vmatprep.subr.mxu0 0.0
    %457 = vmatpush1.xpose.msra.mxu0 0.0
    %458 = vmatprep.subr.mxu0 0.0
    %459 = vmatpush1.xpose.msra.mxu0 0.0
    %460 = vmatprep.subr.mxu0 0.0
    %461 = vmatpush1.xpose.msra.mxu0 0.0
    %462 = vmatprep.subr.mxu0 0.0
    %463 = vmatpush1.xpose.msra.mxu0 0.0
    %464 = vmatprep.subr.mxu0 0.0
    %465 = vmatpush1.xpose.msra.mxu0 0.0
    %466 = vmatprep.subr.mxu0 0.0
    %467 = vmatpush1.xpose.msra.mxu0 0.0
    %468 = vmatprep.subr.mxu0 0.0
    %469 = vmatpush1.xpose.msra.mxu0 0.0
    %470 = vmatprep.subr.mxu0 0.0
    %471 = vmatpush1.xpose.msra.mxu0 0.0
    %472 = vmatprep.subr.mxu0 0.0
    %473 = vmatpush1.xpose.msra.mxu0 0.0
    %474 = vmatprep.subr.mxu0 0.0
    %475 = vmatpush1.xpose.msra.mxu0 0.0
    %476 = vmatprep.subr.mxu0 0.0
    %477 = vmatpush1.xpose.msra.mxu0 0.0
    %478 = vmatprep.subr.mxu0 0.0
    %479 = vmatpush1.xpose.msra.mxu0 0.0
    %480 = vmatprep.subr.mxu0 0.0
    %481 = vmatpush1.xpose.msra.mxu0 0.0
    %482 = vmatprep.subr.mxu0 0.0
    %483 = vmatpush1.xpose.msra.mxu0 0.0
    %484 = vmatprep.subr.mxu0 0.0
    %485 = vmatpush1.xpose.msra.mxu0 0.0
    %486 = vmatprep.subr.mxu0 0.0
    %487 = vmatpush1.xpose.msra.mxu0 0.0
    %488 = vmatprep.subr.mxu0 0.0
    %489 = vmatpush1.xpose.msra.mxu0 0.0
    %490 = vmatprep.subr.mxu0 0.0
    %491 = vmatpush1.xpose.msra.mxu0 0.0
    %492 = vmatprep.mubr.f32.mxu0 0.0
    %493 = vmatmul.mubr.f32.gmra.mrb[0].mxu0 %v424
    %v494 = vpop.f32.mrb[0].mxu0
    %v495 = vadd.f32 0.0, %v494
    %v496 = vpop.f32.mrb[0].mxu0
    %497 = vdwg.mxu0
    %v498 = vsel %vm275, %v252, 0
    %v500 = vsel %vm275, %v266, 0
    %502 = vmatprep.subr.mxu0 0.0
    %503 = vmatpush1.xpose.msra.mxu0 %v500
    %504 = vmatprep.subr.mxu0 0.0
    %505 = vmatpush1.xpose.msra.mxu0 0.0
    %506 = vmatprep.subr.mxu0 0.0
    %507 = vmatpush1.xpose.msra.mxu0 0.0
    %508 = vmatprep.subr.mxu0 0.0
    %509 = vmatpush1.xpose.msra.mxu0 0.0
    %510 = vmatprep.subr.mxu0 0.0
    %511 = vmatpush1.xpose.msra.mxu0 0.0
    %512 = vmatprep.subr.mxu0 0.0
    %513 = vmatpush1.xpose.msra.mxu0 0.0
    %514 = vmatprep.subr.mxu0 0.0
    %515 = vmatpush1.xpose.msra.mxu0 0.0
    %516 = vmatprep.subr.mxu0 0.0
    %517 = vmatpush1.xpose.msra.mxu0 0.0
    %518 = vmatprep.subr.mxu0 0.0
    %519 = vmatpush1.xpose.msra.mxu0 0.0
    %520 = vmatprep.subr.mxu0 0.0
    %521 = vmatpush1.xpose.msra.mxu0 0.0
    %522 = vmatprep.subr.mxu0 0.0
    %523 = vmatpush1.xpose.msra.mxu0 0.0
    %524 = vmatprep.subr.mxu0 0.0
    %525 = vmatpush1.xpose.msra.mxu0 0.0
    %526 = vmatprep.subr.mxu0 0.0
    %527 = vmatpush1.xpose.msra.mxu0 0.0
    %528 = vmatprep.subr.mxu0 0.0
    %529 = vmatpush1.xpose.msra.mxu0 0.0
    %530 = vmatprep.subr.mxu0 0.0
    %531 = vmatpush1.xpose.msra.mxu0 0.0
    %532 = vmatprep.subr.mxu0 0.0
    %533 = vmatpush1.xpose.msra.mxu0 0.0
    %534 = vmatprep.subr.mxu0 0.0
    %535 = vmatpush1.xpose.msra.mxu0 0.0
    %536 = vmatprep.subr.mxu0 0.0
    %537 = vmatpush1.xpose.msra.mxu0 0.0
    %538 = vmatprep.subr.mxu0 0.0
    %539 = vmatpush1.xpose.msra.mxu0 0.0
    %540 = vmatprep.subr.mxu0 0.0
    %541 = vmatpush1.xpose.msra.mxu0 0.0
    %542 = vmatprep.subr.mxu0 0.0
    %543 = vmatpush1.xpose.msra.mxu0 0.0
    %544 = vmatprep.subr.mxu0 0.0
    %545 = vmatpush1.xpose.msra.mxu0 0.0
    %546 = vmatprep.subr.mxu0 0.0
    %547 = vmatpush1.xpose.msra.mxu0 0.0
    %548 = vmatprep.subr.mxu0 0.0
    %549 = vmatpush1.xpose.msra.mxu0 0.0
    %550 = vmatprep.subr.mxu0 0.0
    %551 = vmatpush1.xpose.msra.mxu0 0.0
    %552 = vmatprep.subr.mxu0 0.0
    %553 = vmatpush1.xpose.msra.mxu0 0.0
    %554 = vmatprep.subr.mxu0 0.0
    %555 = vmatpush1.xpose.msra.mxu0 0.0
    %556 = vmatprep.subr.mxu0 0.0
    %557 = vmatpush1.xpose.msra.mxu0 0.0
    %558 = vmatprep.subr.mxu0 0.0
    %559 = vmatpush1.xpose.msra.mxu0 0.0
    %560 = vmatprep.subr.mxu0 0.0
    %561 = vmatpush1.xpose.msra.mxu0 0.0
    %562 = vmatprep.subr.mxu0 0.0
    %563 = vmatpush1.xpose.msra.mxu0 0.0
    %564 = vmatprep.subr.mxu0 0.0
    %565 = vmatpush1.xpose.msra.mxu0 0.0
    %566 = vmatprep.mubr.f32.mxu0 0.0
    %567 = vmatmul.mubr.f32.gmra.mrb[0].mxu0 %v498
    %v568 = vpop.f32.mrb[0].mxu0
    %v569 = vadd.f32 0.0, %v568
    %v570 = vpop.f32.mrb[0].mxu0
    %571 = vdwg.mxu0
    %v572 = vsel %vm275, %v254, 0
    %v574 = vsel %vm275, %v268, 0
    %576 = vmatprep.subr.mxu0 0.0
    %577 = vmatpush1.xpose.msra.mxu0 %v574
    %578 = vmatprep.subr.mxu0 0.0
    %579 = vmatpush1.xpose.msra.mxu0 0.0
    %580 = vmatprep.subr.mxu0 0.0
    %581 = vmatpush1.xpose.msra.mxu0 0.0
    %582 = vmatprep.subr.mxu0 0.0
    %583 = vmatpush1.xpose.msra.mxu0 0.0
    %584 = vmatprep.subr.mxu0 0.0
    %585 = vmatpush1.xpose.msra.mxu0 0.0
    %586 = vmatprep.subr.mxu0 0.0
    %587 = vmatpush1.xpose.msra.mxu0 0.0
    %588 = vmatprep.subr.mxu0 0.0
    %589 = vmatpush1.xpose.msra.mxu0 0.0
    %590 = vmatprep.subr.mxu0 0.0
    %591 = vmatpush1.xpose.msra.mxu0 0.0
    %592 = vmatprep.subr.mxu0 0.0
    %593 = vmatpush1.xpose.msra.mxu0 0.0
    %594 = vmatprep.subr.mxu0 0.0
    %595 = vmatpush1.xpose.msra.mxu0 0.0
    %596 = vmatprep.subr.mxu0 0.0
    %597 = vmatpush1.xpose.msra.mxu0 0.0
    %598 = vmatprep.subr.mxu0 0.0
    %599 = vmatpush1.xpose.msra.mxu0 0.0
    %600 = vmatprep.subr.mxu0 0.0
    %601 = vmatpush1.xpose.msra.mxu0 0.0
    %602 = vmatprep.subr.mxu0 0.0
    %603 = vmatpush1.xpose.msra.mxu0 0.0
    %604 = vmatprep.subr.mxu0 0.0
    %605 = vmatpush1.xpose.msra.mxu0 0.0
    %606 = vmatprep.subr.mxu0 0.0
    %607 = vmatpush1.xpose.msra.mxu0 0.0
    %608 = vmatprep.subr.mxu0 0.0
    %609 = vmatpush1.xpose.msra.mxu0 0.0
    %610 = vmatprep.subr.mxu0 0.0
    %611 = vmatpush1.xpose.msra.mxu0 0.0
    %612 = vmatprep.subr.mxu0 0.0
    %613 = vmatpush1.xpose.msra.mxu0 0.0
    %614 = vmatprep.subr.mxu0 0.0
    %615 = vmatpush1.xpose.msra.mxu0 0.0
    %616 = vmatprep.subr.mxu0 0.0
    %617 = vmatpush1.xpose.msra.mxu0 0.0
    %618 = vmatprep.subr.mxu0 0.0
    %619 = vmatpush1.xpose.msra.mxu0 0.0
    %620 = vmatprep.subr.mxu0 0.0
    %621 = vmatpush1.xpose.msra.mxu0 0.0
    %622 = vmatprep.subr.mxu0 0.0
    %623 = vmatpush1.xpose.msra.mxu0 0.0
    %624 = vmatprep.subr.mxu0 0.0
    %625 = vmatpush1.xpose.msra.mxu0 0.0
    %626 = vmatprep.subr.mxu0 0.0
    %627 = vmatpush1.xpose.msra.mxu0 0.0
    %628 = vmatprep.subr.mxu0 0.0
    %629 = vmatpush1.xpose.msra.mxu0 0.0
    %630 = vmatprep.subr.mxu0 0.0
    %631 = vmatpush1.xpose.msra.mxu0 0.0
    %632 = vmatprep.subr.mxu0 0.0
    %633 = vmatpush1.xpose.msra.mxu0 0.0
    %634 = vmatprep.subr.mxu0 0.0
    %635 = vmatpush1.xpose.msra.mxu0 0.0
    %636 = vmatprep.subr.mxu0 0.0
    %637 = vmatpush1.xpose.msra.mxu0 0.0
    %638 = vmatprep.subr.mxu0 0.0
    %639 = vmatpush1.xpose.msra.mxu0 0.0
    %640 = vmatprep.mubr.f32.mxu0 0.0
    %641 = vmatmul.mubr.f32.gmra.mrb[0].mxu0 %v572
    %v642 = vpop.f32.mrb[0].mxu0
    %v643 = vadd.f32 0.0, %v642
    %v644 = vpop.f32.mrb[0].mxu0
    %645 = vdwg.mxu0
    %v646 = vsel %vm275, %v256, 0
    %v648 = vsel %vm275, %v270, 0
    %650 = vmatprep.subr.mxu0 0.0
    %651 = vmatpush1.xpose.msra.mxu0 %v648
    %652 = vmatprep.subr.mxu0 0.0
    %653 = vmatpush1.xpose.msra.mxu0 0.0
    %654 = vmatprep.subr.mxu0 0.0
    %655 = vmatpush1.xpose.msra.mxu0 0.0
    %656 = vmatprep.subr.mxu0 0.0
    %657 = vmatpush1.xpose.msra.mxu0 0.0
    %658 = vmatprep.subr.mxu0 0.0
    %659 = vmatpush1.xpose.msra.mxu0 0.0
    %660 = vmatprep.subr.mxu0 0.0
    %661 = vmatpush1.xpose.msra.mxu0 0.0
    %662 = vmatprep.subr.mxu0 0.0
    %663 = vmatpush1.xpose.msra.mxu0 0.0
    %664 = vmatprep.subr.mxu0 0.0
    %665 = vmatpush1.xpose.msra.mxu0 0.0
    %666 = vmatprep.subr.mxu0 0.0
    %667 = vmatpush1.xpose.msra.mxu0 0.0
    %668 = vmatprep.subr.mxu0 0.0
    %669 = vmatpush1.xpose.msra.mxu0 0.0
    %670 = vmatprep.subr.mxu0 0.0
    %671 = vmatpush1.xpose.msra.mxu0 0.0
    %672 = vmatprep.subr.mxu0 0.0
    %673 = vmatpush1.xpose.msra.mxu0 0.0
    %674 = vmatprep.subr.mxu0 0.0
    %675 = vmatpush1.xpose.msra.mxu0 0.0
    %676 = vmatprep.subr.mxu0 0.0
    %677 = vmatpush1.xpose.msra.mxu0 0.0
    %678 = vmatprep.subr.mxu0 0.0
    %679 = vmatpush1.xpose.msra.mxu0 0.0
    %680 = vmatprep.subr.mxu0 0.0
    %681 = vmatpush1.xpose.msra.mxu0 0.0
    %682 = vmatprep.subr.mxu0 0.0
    %683 = vmatpush1.xpose.msra.mxu0 0.0
    %684 = vmatprep.subr.mxu0 0.0
    %685 = vmatpush1.xpose.msra.mxu0 0.0
    %686 = vmatprep.subr.mxu0 0.0
    %687 = vmatpush1.xpose.msra.mxu0 0.0
    %688 = vmatprep.subr.mxu0 0.0
    %689 = vmatpush1.xpose.msra.mxu0 0.0
    %690 = vmatprep.subr.mxu0 0.0
    %691 = vmatpush1.xpose.msra.mxu0 0.0
    %692 = vmatprep.subr.mxu0 0.0
    %693 = vmatpush1.xpose.msra.mxu0 0.0
    %694 = vmatprep.subr.mxu0 0.0
    %695 = vmatpush1.xpose.msra.mxu0 0.0
    %696 = vmatprep.subr.mxu0 0.0
    %697 = vmatpush1.xpose.msra.mxu0 0.0
    %698 = vmatprep.subr.mxu0 0.0
    %699 = vmatpush1.xpose.msra.mxu0 0.0
    %700 = vmatprep.subr.mxu0 0.0
    %701 = vmatpush1.xpose.msra.mxu0 0.0
    %702 = vmatprep.subr.mxu0 0.0
    %703 = vmatpush1.xpose.msra.mxu0 0.0
    %704 = vmatprep.subr.mxu0 0.0
    %705 = vmatpush1.xpose.msra.mxu0 0.0
    %706 = vmatprep.subr.mxu0 0.0
    %707 = vmatpush1.xpose.msra.mxu0 0.0
    %708 = vmatprep.subr.mxu0 0.0
    %709 = vmatpush1.xpose.msra.mxu0 0.0
    %710 = vmatprep.subr.mxu0 0.0
    %711 = vmatpush1.xpose.msra.mxu0 0.0
    %712 = vmatprep.subr.mxu0 0.0
    %713 = vmatpush1.xpose.msra.mxu0 0.0
    %714 = vmatprep.mubr.f32.mxu0 0.0
    %715 = vmatmul.mubr.f32.gmra.mrb[0].mxu0 %v646
    %v716 = vpop.f32.mrb[0].mxu0
    %v717 = vadd.f32 0.0, %v716
    %v718 = vpop.f32.mrb[0].mxu0
    %719 = vdwg.mxu0
    %v720 = vsel %vm275, %v258, 0
    %v722 = vsel %vm275, %v272, 0
    %724 = vmatprep.subr.mxu0 0.0
    %725 = vmatpush1.xpose.msra.mxu0 %v722
    %726 = vmatprep.subr.mxu0 0.0
    %727 = vmatpush1.xpose.msra.mxu0 0.0
    %728 = vmatprep.subr.mxu0 0.0
    %729 = vmatpush1.xpose.msra.mxu0 0.0
    %730 = vmatprep.subr.mxu0 0.0
    %731 = vmatpush1.xpose.msra.mxu0 0.0
    %732 = vmatprep.subr.mxu0 0.0
    %733 = vmatpush1.xpose.msra.mxu0 0.0
    %734 = vmatprep.subr.mxu0 0.0
    %735 = vmatpush1.xpose.msra.mxu0 0.0
    %736 = vmatprep.subr.mxu0 0.0
    %737 = vmatpush1.xpose.msra.mxu0 0.0
    %738 = vmatprep.subr.mxu0 0.0
    %739 = vmatpush1.xpose.msra.mxu0 0.0
    %740 = vmatprep.subr.mxu0 0.0
    %741 = vmatpush1.xpose.msra.mxu0 0.0
    %742 = vmatprep.subr.mxu0 0.0
    %743 = vmatpush1.xpose.msra.mxu0 0.0
    %744 = vmatprep.subr.mxu0 0.0
    %745 = vmatpush1.xpose.msra.mxu0 0.0
    %746 = vmatprep.subr.mxu0 0.0
    %747 = vmatpush1.xpose.msra.mxu0 0.0
    %748 = vmatprep.subr.mxu0 0.0
    %749 = vmatpush1.xpose.msra.mxu0 0.0
    %750 = vmatprep.subr.mxu0 0.0
    %751 = vmatpush1.xpose.msra.mxu0 0.0
    %752 = vmatprep.subr.mxu0 0.0
    %753 = vmatpush1.xpose.msra.mxu0 0.0
    %754 = vmatprep.subr.mxu0 0.0
    %755 = vmatpush1.xpose.msra.mxu0 0.0
    %756 = vmatprep.subr.mxu0 0.0
    %757 = vmatpush1.xpose.msra.mxu0 0.0
    %758 = vmatprep.subr.mxu0 0.0
    %759 = vmatpush1.xpose.msra.mxu0 0.0
    %760 = vmatprep.subr.mxu0 0.0
    %761 = vmatpush1.xpose.msra.mxu0 0.0
    %762 = vmatprep.subr.mxu0 0.0
    %763 = vmatpush1.xpose.msra.mxu0 0.0
    %764 = vmatprep.subr.mxu0 0.0
    %765 = vmatpush1.xpose.msra.mxu0 0.0
    %766 = vmatprep.subr.mxu0 0.0
    %767 = vmatpush1.xpose.msra.mxu0 0.0
    %768 = vmatprep.subr.mxu0 0.0
    %769 = vmatpush1.xpose.msra.mxu0 0.0
    %770 = vmatprep.subr.mxu0 0.0
    %771 = vmatpush1.xpose.msra.mxu0 0.0
    %772 = vmatprep.subr.mxu0 0.0
    %773 = vmatpush1.xpose.msra.mxu0 0.0
    %774 = vmatprep.subr.mxu0 0.0
    %775 = vmatpush1.xpose.msra.mxu0 0.0
    %776 = vmatprep.subr.mxu0 0.0
    %777 = vmatpush1.xpose.msra.mxu0 0.0
    %778 = vmatprep.subr.mxu0 0.0
    %779 = vmatpush1.xpose.msra.mxu0 0.0
    %780 = vmatprep.subr.mxu0 0.0
    %781 = vmatpush1.xpose.msra.mxu0 0.0
    %782 = vmatprep.subr.mxu0 0.0
    %783 = vmatpush1.xpose.msra.mxu0 0.0
    %784 = vmatprep.subr.mxu0 0.0
    %785 = vmatpush1.xpose.msra.mxu0 0.0
    %786 = vmatprep.subr.mxu0 0.0
    %787 = vmatpush1.xpose.msra.mxu0 0.0
    %788 = vmatprep.mubr.f32.mxu0 0.0
    %789 = vmatmul.mubr.f32.gmra.mrb[0].mxu0 %v720
    %v790 = vpop.f32.mrb[0].mxu0
    %v791 = vadd.f32 0.0, %v790
    %v792 = vpop.f32.mrb[0].mxu0
    %793 = vdwg.mxu0
    %v794 = vsel %vm275, %v260, 0
    %v796 = vsel %vm275, %v274, 0
    %798 = vmatprep.subr.mxu0 0.0
    %799 = vmatpush1.xpose.msra.mxu0 %v796
    %800 = vmatprep.subr.mxu0 0.0
    %801 = vmatpush1.xpose.msra.mxu0 0.0
    %802 = vmatprep.subr.mxu0 0.0
    %803 = vmatpush1.xpose.msra.mxu0 0.0
    %804 = vmatprep.subr.mxu0 0.0
    %805 = vmatpush1.xpose.msra.mxu0 0.0
    %806 = vmatprep.subr.mxu0 0.0
    %807 = vmatpush1.xpose.msra.mxu0 0.0
    %808 = vmatprep.subr.mxu0 0.0
    %809 = vmatpush1.xpose.msra.mxu0 0.0
    %810 = vmatprep.subr.mxu0 0.0
    %811 = vmatpush1.xpose.msra.mxu0 0.0
    %812 = vmatprep.subr.mxu0 0.0
    %813 = vmatpush1.xpose.msra.mxu0 0.0
    %814 = vmatprep.subr.mxu0 0.0
    %815 = vmatpush1.xpose.msra.mxu0 0.0
    %816 = vmatprep.subr.mxu0 0.0
    %817 = vmatpush1.xpose.msra.mxu0 0.0
    %818 = vmatprep.subr.mxu0 0.0
    %819 = vmatpush1.xpose.msra.mxu0 0.0
    %820 = vmatprep.subr.mxu0 0.0
    %821 = vmatpush1.xpose.msra.mxu0 0.0
    %822 = vmatprep.subr.mxu0 0.0
    %823 = vmatpush1.xpose.msra.mxu0 0.0
    %824 = vmatprep.subr.mxu0 0.0
    %825 = vmatpush1.xpose.msra.mxu0 0.0
    %826 = vmatprep.subr.mxu0 0.0
    %827 = vmatpush1.xpose.msra.mxu0 0.0
    %828 = vmatprep.subr.mxu0 0.0
    %829 = vmatpush1.xpose.msra.mxu0 0.0
    %830 = vmatprep.subr.mxu0 0.0
    %831 = vmatpush1.xpose.msra.mxu0 0.0
    %832 = vmatprep.subr.mxu0 0.0
    %833 = vmatpush1.xpose.msra.mxu0 0.0
    %834 = vmatprep.subr.mxu0 0.0
    %835 = vmatpush1.xpose.msra.mxu0 0.0
    %836 = vmatprep.subr.mxu0 0.0
    %837 = vmatpush1.xpose.msra.mxu0 0.0
    %838 = vmatprep.subr.mxu0 0.0
    %839 = vmatpush1.xpose.msra.mxu0 0.0
    %840 = vmatprep.subr.mxu0 0.0
    %841 = vmatpush1.xpose.msra.mxu0 0.0
    %842 = vmatprep.subr.mxu0 0.0
    %843 = vmatpush1.xpose.msra.mxu0 0.0
    %844 = vmatprep.subr.mxu0 0.0
    %845 = vmatpush1.xpose.msra.mxu0 0.0
    %846 = vmatprep.subr.mxu0 0.0
    %847 = vmatpush1.xpose.msra.mxu0 0.0
    %848 = vmatprep.subr.mxu0 0.0
    %849 = vmatpush1.xpose.msra.mxu0 0.0
    %850 = vmatprep.subr.mxu0 0.0
    %851 = vmatpush1.xpose.msra.mxu0 0.0
    %852 = vmatprep.subr.mxu0 0.0
    %853 = vmatpush1.xpose.msra.mxu0 0.0
    %854 = vmatprep.subr.mxu0 0.0
    %855 = vmatpush1.xpose.msra.mxu0 0.0
    %856 = vmatprep.subr.mxu0 0.0
    %857 = vmatpush1.xpose.msra.mxu0 0.0
    %858 = vmatprep.subr.mxu0 0.0
    %859 = vmatpush1.xpose.msra.mxu0 0.0
    %860 = vmatprep.subr.mxu0 0.0
    %861 = vmatpush1.xpose.msra.mxu0 0.0
    %862 = vmatprep.mubr.f32.mxu0 0.0
    %863 = vmatmul.mubr.f32.gmra.mrb[0].mxu0 %v794
    %v864 = vpop.f32.mrb[0].mxu0
    %v865 = vadd.f32 0.0, %v864
    %v866 = vpop.f32.mrb[0].mxu0
    %867 = vdwg.mxu0
    %v868 = vmul.f32 %v347, 0.25
    %v869 = vmul.f32 %v421, 0.25
    %v870 = vmul.f32 %v495, 0.25
    %v871 = vmul.f32 %v569, 0.25
    %v872 = vmul.f32 %v643, 0.25
    %v873 = vmul.f32 %v717, 0.25
    %v874 = vmul.f32 %v791, 0.25
    %v875 = vmul.f32 %v865, 0.25
    %v876 = vsel %vm275, %v868, -inf
    %877 = vmax.xlane.f32.xlu0 %v876
    %v878 = vpop.xlane.xlu0 %877
    %v879 = vsel %vm275, %v869, -inf
    %880 = vmax.xlane.f32.xlu0 %v879
    %v881 = vpop.xlane.xlu0 %880
    %v882 = vsel %vm275, %v870, -inf
    %883 = vmax.xlane.f32.xlu0 %v882
    %v884 = vpop.xlane.xlu0 %883
    %v885 = vsel %vm275, %v871, -inf
    %886 = vmax.xlane.f32.xlu0 %v885
    %v887 = vpop.xlane.xlu0 %886
    %v888 = vsel %vm275, %v872, -inf
    %889 = vmax.xlane.f32.xlu0 %v888
    %v890 = vpop.xlane.xlu0 %889
    %v891 = vsel %vm275, %v873, -inf
    %892 = vmax.xlane.f32.xlu0 %v891
    %v893 = vpop.xlane.xlu0 %892
    %v894 = vsel %vm275, %v874, -inf
    %895 = vmax.xlane.f32.xlu0 %v894
    %v896 = vpop.xlane.xlu0 %895
    %v897 = vsel %vm275, %v875, -inf
    %898 = vmax.xlane.f32.xlu0 %v897
    %v899 = vpop.xlane.xlu0 %898
    %v900 = vsub.f32 %v868, %v878
    %v901 = vsub.f32 %v869, %v881
    %v902 = vsub.f32 %v870, %v884
    %v903 = vsub.f32 %v871, %v887
    %v904 = vsub.f32 %v872, %v890
    %v905 = vsub.f32 %v873, %v893
    %v906 = vsub.f32 %v874, %v896
    %v907 = vsub.f32 %v875, %v899
    %v908 = vmul.f32 %v900, 1.442695
    %v909 = vpow.pop %v908
    %v910 = vmul.f32 %v901, 1.442695
    %v911 = vpow.pop %v910
    %v912 = vmul.f32 %v902, 1.442695
    %v913 = vpow.pop %v912
    %v914 = vmul.f32 %v903, 1.442695
    %v915 = vpow.pop %v914
    %v916 = vmul.f32 %v904, 1.442695
    %v917 = vpow.pop %v916
    %v918 = vmul.f32 %v905, 1.442695
    %v919 = vpow.pop %v918
    %v920 = vmul.f32 %v906, 1.442695
    %v921 = vpow.pop %v920
    %v922 = vmul.f32 %v907, 1.442695
    %v923 = vpow.pop %v922
    %v924 = vsel %vm275, %v909, 0.0
    %925 = vadd.xlane.f32.xlu0 %v924
    %v926 = vpop.xlane.xlu0 %925
    %v927 = vsel %vm275, %v911, 0.0
    %928 = vadd.xlane.f32.xlu0 %v927
    %v929 = vpop.xlane.xlu0 %928
    %v930 = vsel %vm275, %v913, 0.0
    %931 = vadd.xlane.f32.xlu0 %v930
    %v932 = vpop.xlane.xlu0 %931
    %v933 = vsel %vm275, %v915, 0.0
    %934 = vadd.xlane.f32.xlu0 %v933
    %v935 = vpop.xlane.xlu0 %934
    %v936 = vsel %vm275, %v917, 0.0
    %937 = vadd.xlane.f32.xlu0 %v936
    %v938 = vpop.xlane.xlu0 %937
    %v939 = vsel %vm275, %v919, 0.0
    %940 = vadd.xlane.f32.xlu0 %v939
    %v941 = vpop.xlane.xlu0 %940
    %v942 = vsel %vm275, %v921, 0.0
    %943 = vadd.xlane.f32.xlu0 %v942
    %v944 = vpop.xlane.xlu0 %943
    %v945 = vsel %vm275, %v923, 0.0
    %946 = vadd.xlane.f32.xlu0 %v945
    %v947 = vpop.xlane.xlu0 %946
    %v948 = vrcp.pop %v926
    %v949 = vrcp.pop %v929
    %v950 = vrcp.pop %v932
    %v951 = vrcp.pop %v935
    %v952 = vrcp.pop %v938
    %v953 = vrcp.pop %v941
    %v954 = vrcp.pop %v944
    %v955 = vrcp.pop %v947
    %v956 = vmul.f32 %v926, %v948
    %v957 = vmul.f32 %v929, %v949
    %v958 = vmul.f32 %v932, %v950
    %v959 = vmul.f32 %v935, %v951
    %v960 = vmul.f32 %v938, %v952
    %v961 = vmul.f32 %v941, %v953
    %v962 = vmul.f32 %v944, %v954
    %v963 = vmul.f32 %v947, %v955
    %v964 = vsub.f32 2.0, %v956
    %v965 = vsub.f32 2.0, %v957
    %v966 = vsub.f32 2.0, %v958
    %v967 = vsub.f32 2.0, %v959
    %v968 = vsub.f32 2.0, %v960
    %v969 = vsub.f32 2.0, %v961
    %v970 = vsub.f32 2.0, %v962
    %v971 = vsub.f32 2.0, %v963
    %v972 = vmul.f32 %v948, %v964
    %v973 = vmul.f32 %v949, %v965
    %v974 = vmul.f32 %v950, %v966
    %v975 = vmul.f32 %v951, %v967
    %v976 = vmul.f32 %v952, %v968
    %v977 = vmul.f32 %v953, %v969
    %v978 = vmul.f32 %v954, %v970
    %v979 = vmul.f32 %v955, %v971
    %v980 = vmul.f32 %v909, %v972
    %v981 = vmul.f32 %v911, %v973
    %v982 = vmul.f32 %v913, %v974
    %v983 = vmul.f32 %v915, %v975
    %v984 = vmul.f32 %v917, %v976
    %v985 = vmul.f32 %v919, %v977
    %v986 = vmul.f32 %v921, %v978
    %v987 = vmul.f32 %v923, %v979
    %988 = vrot.lane.b32.xlu0 %v239, 96
    %v989 = vpop.permute.xlu0 %988
    %v992 = vsel %vm275, %v980, 0
    %994 = vmatprep.subr.mxu0 0.0
    %995 = vmatpush1.msra.mxu0 %v989
    %996 = vmatprep.subr.mxu0 0.0
    %997 = vmatpush1.msra.mxu0 0.0
    %998 = vmatprep.subr.mxu0 0.0
    %999 = vmatpush1.msra.mxu0 0.0
    %1000 = vmatprep.subr.mxu0 0.0
    %1001 = vmatpush1.msra.mxu0 0.0
    %1002 = vmatprep.subr.mxu0 0.0
    %1003 = vmatpush1.msra.mxu0 0.0
    %1004 = vmatprep.subr.mxu0 0.0
    %1005 = vmatpush1.msra.mxu0 0.0
    %1006 = vmatprep.subr.mxu0 0.0
    %1007 = vmatpush1.msra.mxu0 0.0
    %1008 = vmatprep.subr.mxu0 0.0
    %1009 = vmatpush1.msra.mxu0 0.0
    %1010 = vmatprep.subr.mxu0 0.0
    %1011 = vmatpush1.msra.mxu0 0.0
    %1012 = vmatprep.subr.mxu0 0.0
    %1013 = vmatpush1.msra.mxu0 0.0
    %1014 = vmatprep.subr.mxu0 0.0
    %1015 = vmatpush1.msra.mxu0 0.0
    %1016 = vmatprep.subr.mxu0 0.0
    %1017 = vmatpush1.msra.mxu0 0.0
    %1018 = vmatprep.subr.mxu0 0.0
    %1019 = vmatpush1.msra.mxu0 0.0
    %1020 = vmatprep.subr.mxu0 0.0
    %1021 = vmatpush1.msra.mxu0 0.0
    %1022 = vmatprep.subr.mxu0 0.0
    %1023 = vmatpush1.msra.mxu0 0.0
    %1024 = vmatprep.subr.mxu0 0.0
    %1025 = vmatpush1.msra.mxu0 0.0
    %1026 = vmatprep.subr.mxu0 0.0
    %1027 = vmatpush1.msra.mxu0 0.0
    %1028 = vmatprep.subr.mxu0 0.0
    %1029 = vmatpush1.msra.mxu0 0.0
    %1030 = vmatprep.subr.mxu0 0.0
    %1031 = vmatpush1.msra.mxu0 0.0
    %1032 = vmatprep.subr.mxu0 0.0
    %1033 = vmatpush1.msra.mxu0 0.0
    %1034 = vmatprep.subr.mxu0 0.0
    %1035 = vmatpush1.msra.mxu0 0.0
    %1036 = vmatprep.subr.mxu0 0.0
    %1037 = vmatpush1.msra.mxu0 0.0
    %1038 = vmatprep.subr.mxu0 0.0
    %1039 = vmatpush1.msra.mxu0 0.0
    %1040 = vmatprep.subr.mxu0 0.0
    %1041 = vmatpush1.msra.mxu0 0.0
    %1042 = vmatprep.subr.mxu0 0.0
    %1043 = vmatpush1.msra.mxu0 0.0
    %1044 = vmatprep.subr.mxu0 0.0
    %1045 = vmatpush1.msra.mxu0 0.0
    %1046 = vmatprep.subr.mxu0 0.0
    %1047 = vmatpush1.msra.mxu0 0.0
    %1048 = vmatprep.subr.mxu0 0.0
    %1049 = vmatpush1.msra.mxu0 0.0
    %1050 = vmatprep.subr.mxu0 0.0
    %1051 = vmatpush1.msra.mxu0 0.0
    %1052 = vmatprep.subr.mxu0 0.0
    %1053 = vmatpush1.msra.mxu0 0.0
    %1054 = vmatprep.subr.mxu0 0.0
    %1055 = vmatpush1.msra.mxu0 0.0
    %1056 = vmatprep.subr.mxu0 0.0
    %1057 = vmatpush1.msra.mxu0 0.0
    %1058 = vmatprep.mubr.f32.mxu0 0.0
    %1059 = vmatmul.mubr.f32.gmra.mrb[0].mxu0 %v992
    %v1060 = vpop.f32.mrb[0].mxu0
    %v1061 = vadd.f32 0.0, %v1060
    %v1062 = vpop.f32.mrb[0].mxu0
    %1063 = vdwg.mxu0
    %1064 = vrot.lane.b32.xlu0 %v244, 96
    %v1065 = vpop.permute.xlu0 %1064
    %v1068 = vsel %vm275, %v981, 0
    %1070 = vmatprep.subr.mxu0 0.0
    %1071 = vmatpush1.msra.mxu0 %v1065
    %1072 = vmatprep.subr.mxu0 0.0
    %1073 = vmatpush1.msra.mxu0 0.0
    %1074 = vmatprep.subr.mxu0 0.0
    %1075 = vmatpush1.msra.mxu0 0.0
    %1076 = vmatprep.subr.mxu0 0.0
    %1077 = vmatpush1.msra.mxu0 0.0
    %1078 = vmatprep.subr.mxu0 0.0
    %1079 = vmatpush1.msra.mxu0 0.0
    %1080 = vmatprep.subr.mxu0 0.0
    %1081 = vmatpush1.msra.mxu0 0.0
    %1082 = vmatprep.subr.mxu0 0.0
    %1083 = vmatpush1.msra.mxu0 0.0
    %1084 = vmatprep.subr.mxu0 0.0
    %1085 = vmatpush1.msra.mxu0 0.0
    %1086 = vmatprep.subr.mxu0 0.0
    %1087 = vmatpush1.msra.mxu0 0.0
    %1088 = vmatprep.subr.mxu0 0.0
    %1089 = vmatpush1.msra.mxu0 0.0
    %1090 = vmatprep.subr.mxu0 0.0
    %1091 = vmatpush1.msra.mxu0 0.0
    %1092 = vmatprep.subr.mxu0 0.0
    %1093 = vmatpush1.msra.mxu0 0.0
    %1094 = vmatprep.subr.mxu0 0.0
    %1095 = vmatpush1.msra.mxu0 0.0
    %1096 = vmatprep.subr.mxu0 0.0
    %1097 = vmatpush1.msra.mxu0 0.0
    %1098 = vmatprep.subr.mxu0 0.0
    %1099 = vmatpush1.msra.mxu0 0.0
    %1100 = vmatprep.subr.mxu0 0.0
    %1101 = vmatpush1.msra.mxu0 0.0
    %1102 = vmatprep.subr.mxu0 0.0
    %1103 = vmatpush1.msra.mxu0 0.0
    %1104 = vmatprep.subr.mxu0 0.0
    %1105 = vmatpush1.msra.mxu0 0.0
    %1106 = vmatprep.subr.mxu0 0.0
    %1107 = vmatpush1.msra.mxu0 0.0
    %1108 = vmatprep.subr.mxu0 0.0
    %1109 = vmatpush1.msra.mxu0 0.0
    %1110 = vmatprep.subr.mxu0 0.0
    %1111 = vmatpush1.msra.mxu0 0.0
    %1112 = vmatprep.subr.mxu0 0.0
    %1113 = vmatpush1.msra.mxu0 0.0
    %1114 = vmatprep.subr.mxu0 0.0
    %1115 = vmatpush1.msra.mxu0 0.0
    %1116 = vmatprep.subr.mxu0 0.0
    %1117 = vmatpush1.msra.mxu0 0.0
    %1118 = vmatprep.subr.mxu0 0.0
    %1119 = vmatpush1.msra.mxu0 0.0
    %1120 = vmatprep.subr.mxu0 0.0
    %1121 = vmatpush1.msra.mxu0 0.0
    %1122 = vmatprep.subr.mxu0 0.0
    %1123 = vmatpush1.msra.mxu0 0.0
    %1124 = vmatprep.subr.mxu0 0.0
    %1125 = vmatpush1.msra.mxu0 0.0
    %1126 = vmatprep.subr.mxu0 0.0
    %1127 = vmatpush1.msra.mxu0 0.0
    %1128 = vmatprep.subr.mxu0 0.0
    %1129 = vmatpush1.msra.mxu0 0.0
    %1130 = vmatprep.subr.mxu0 0.0
    %1131 = vmatpush1.msra.mxu0 0.0
    %1132 = vmatprep.subr.mxu0 0.0
    %1133 = vmatpush1.msra.mxu0 0.0
    %1134 = vmatprep.mubr.f32.mxu0 0.0
    %1135 = vmatmul.mubr.f32.gmra.mrb[0].mxu0 %v1068
    %v1136 = vpop.f32.mrb[0].mxu0
    %v1137 = vadd.f32 0.0, %v1136
    %v1138 = vpop.f32.mrb[0].mxu0
    %1139 = vdwg.mxu0
    %1140 = vrot.lane.b32.xlu0 %v264, 96
    %v1141 = vpop.permute.xlu0 %1140
    %v1144 = vsel %vm275, %v982, 0
    %1146 = vmatprep.subr.mxu0 0.0
    %1147 = vmatpush1.msra.mxu0 %v1141
    %1148 = vmatprep.subr.mxu0 0.0
    %1149 = vmatpush1.msra.mxu0 0.0
    %1150 = vmatprep.subr.mxu0 0.0
    %1151 = vmatpush1.msra.mxu0 0.0
    %1152 = vmatprep.subr.mxu0 0.0
    %1153 = vmatpush1.msra.mxu0 0.0
    %1154 = vmatprep.subr.mxu0 0.0
    %1155 = vmatpush1.msra.mxu0 0.0
    %1156 = vmatprep.subr.mxu0 0.0
    %1157 = vmatpush1.msra.mxu0 0.0
    %1158 = vmatprep.subr.mxu0 0.0
    %1159 = vmatpush1.msra.mxu0 0.0
    %1160 = vmatprep.subr.mxu0 0.0
    %1161 = vmatpush1.msra.mxu0 0.0
    %1162 = vmatprep.subr.mxu0 0.0
    %1163 = vmatpush1.msra.mxu0 0.0
    %1164 = vmatprep.subr.mxu0 0.0
    %1165 = vmatpush1.msra.mxu0 0.0
    %1166 = vmatprep.subr.mxu0 0.0
    %1167 = vmatpush1.msra.mxu0 0.0
    %1168 = vmatprep.subr.mxu0 0.0
    %1169 = vmatpush1.msra.mxu0 0.0
    %1170 = vmatprep.subr.mxu0 0.0
    %1171 = vmatpush1.msra.mxu0 0.0
    %1172 = vmatprep.subr.mxu0 0.0
    %1173 = vmatpush1.msra.mxu0 0.0
    %1174 = vmatprep.subr.mxu0 0.0
    %1175 = vmatpush1.msra.mxu0 0.0
    %1176 = vmatprep.subr.mxu0 0.0
    %1177 = vmatpush1.msra.mxu0 0.0
    %1178 = vmatprep.subr.mxu0 0.0
    %1179 = vmatpush1.msra.mxu0 0.0
    %1180 = vmatprep.subr.mxu0 0.0
    %1181 = vmatpush1.msra.mxu0 0.0
    %1182 = vmatprep.subr.mxu0 0.0
    %1183 = vmatpush1.msra.mxu0 0.0
    %1184 = vmatprep.subr.mxu0 0.0
    %1185 = vmatpush1.msra.mxu0 0.0
    %1186 = vmatprep.subr.mxu0 0.0
    %1187 = vmatpush1.msra.mxu0 0.0
    %1188 = vmatprep.subr.mxu0 0.0
    %1189 = vmatpush1.msra.mxu0 0.0
    %1190 = vmatprep.subr.mxu0 0.0
    %1191 = vmatpush1.msra.mxu0 0.0
    %1192 = vmatprep.subr.mxu0 0.0
    %1193 = vmatpush1.msra.mxu0 0.0
    %1194 = vmatprep.subr.mxu0 0.0
    %1195 = vmatpush1.msra.mxu0 0.0
    %1196 = vmatprep.subr.mxu0 0.0
    %1197 = vmatpush1.msra.mxu0 0.0
    %1198 = vmatprep.subr.mxu0 0.0
    %1199 = vmatpush1.msra.mxu0 0.0
    %1200 = vmatprep.subr.mxu0 0.0
    %1201 = vmatpush1.msra.mxu0 0.0
    %1202 = vmatprep.subr.mxu0 0.0
    %1203 = vmatpush1.msra.mxu0 0.0
    %1204 = vmatprep.subr.mxu0 0.0
    %1205 = vmatpush1.msra.mxu0 0.0
    %1206 = vmatprep.subr.mxu0 0.0
    %1207 = vmatpush1.msra.mxu0 0.0
    %1208 = vmatprep.subr.mxu0 0.0
    %1209 = vmatpush1.msra.mxu0 0.0
    %1210 = vmatprep.mubr.f32.mxu0 0.0
    %1211 = vmatmul.mubr.f32.gmra.mrb[0].mxu0 %v1144
    %v1212 = vpop.f32.mrb[0].mxu0
    %v1213 = vadd.f32 0.0, %v1212
    %v1214 = vpop.f32.mrb[0].mxu0
    %1215 = vdwg.mxu0
    %1216 = vrot.lane.b32.xlu0 %v266, 96
    %v1217 = vpop.permute.xlu0 %1216
    %v1220 = vsel %vm275, %v983, 0
    %1222 = vmatprep.subr.mxu0 0.0
    %1223 = vmatpush1.msra.mxu0 %v1217
    %1224 = vmatprep.subr.mxu0 0.0
    %1225 = vmatpush1.msra.mxu0 0.0
    %1226 = vmatprep.subr.mxu0 0.0
    %1227 = vmatpush1.msra.mxu0 0.0
    %1228 = vmatprep.subr.mxu0 0.0
    %1229 = vmatpush1.msra.mxu0 0.0
    %1230 = vmatprep.subr.mxu0 0.0
    %1231 = vmatpush1.msra.mxu0 0.0
    %1232 = vmatprep.subr.mxu0 0.0
    %1233 = vmatpush1.msra.mxu0 0.0
    %1234 = vmatprep.subr.mxu0 0.0
    %1235 = vmatpush1.msra.mxu0 0.0
    %1236 = vmatprep.subr.mxu0 0.0
    %1237 = vmatpush1.msra.mxu0 0.0
    %1238 = vmatprep.subr.mxu0 0.0
    %1239 = vmatpush1.msra.mxu0 0.0
    %1240 = vmatprep.subr.mxu0 0.0
    %1241 = vmatpush1.msra.mxu0 0.0
    %1242 = vmatprep.subr.mxu0 0.0
    %1243 = vmatpush1.msra.mxu0 0.0
    %1244 = vmatprep.subr.mxu0 0.0
    %1245 = vmatpush1.msra.mxu0 0.0
    %1246 = vmatprep.subr.mxu0 0.0
    %1247 = vmatpush1.msra.mxu0 0.0
    %1248 = vmatprep.subr.mxu0 0.0
    %1249 = vmatpush1.msra.mxu0 0.0
    %1250 = vmatprep.subr.mxu0 0.0
    %1251 = vmatpush1.msra.mxu0 0.0
    %1252 = vmatprep.subr.mxu0 0.0
    %1253 = vmatpush1.msra.mxu0 0.0
    %1254 = vmatprep.subr.mxu0 0.0
    %1255 = vmatpush1.msra.mxu0 0.0
    %1256 = vmatprep.subr.mxu0 0.0
    %1257 = vmatpush1.msra.mxu0 0.0
    %1258 = vmatprep.subr.mxu0 0.0
    %1259 = vmatpush1.msra.mxu0 0.0
    %1260 = vmatprep.subr.mxu0 0.0
    %1261 = vmatpush1.msra.mxu0 0.0
    %1262 = vmatprep.subr.mxu0 0.0
    %1263 = vmatpush1.msra.mxu0 0.0
    %1264 = vmatprep.subr.mxu0 0.0
    %1265 = vmatpush1.msra.mxu0 0.0
    %1266 = vmatprep.subr.mxu0 0.0
    %1267 = vmatpush1.msra.mxu0 0.0
    %1268 = vmatprep.subr.mxu0 0.0
    %1269 = vmatpush1.msra.mxu0 0.0
    %1270 = vmatprep.subr.mxu0 0.0
    %1271 = vmatpush1.msra.mxu0 0.0
    %1272 = vmatprep.subr.mxu0 0.0
    %1273 = vmatpush1.msra.mxu0 0.0
    %1274 = vmatprep.subr.mxu0 0.0
    %1275 = vmatpush1.msra.mxu0 0.0
    %1276 = vmatprep.subr.mxu0 0.0
    %1277 = vmatpush1.msra.mxu0 0.0
    %1278 = vmatprep.subr.mxu0 0.0
    %1279 = vmatpush1.msra.mxu0 0.0
    %1280 = vmatprep.subr.mxu0 0.0
    %1281 = vmatpush1.msra.mxu0 0.0
    %1282 = vmatprep.subr.mxu0 0.0
    %1283 = vmatpush1.msra.mxu0 0.0
    %1284 = vmatprep.subr.mxu0 0.0
    %1285 = vmatpush1.msra.mxu0 0.0
    %1286 = vmatprep.mubr.f32.mxu0 0.0
    %1287 = vmatmul.mubr.f32.gmra.mrb[0].mxu0 %v1220
    %v1288 = vpop.f32.mrb[0].mxu0
    %v1289 = vadd.f32 0.0, %v1288
    %v1290 = vpop.f32.mrb[0].mxu0
    %1291 = vdwg.mxu0
    %1292 = vrot.lane.b32.xlu0 %v268, 96
    %v1293 = vpop.permute.xlu0 %1292
    %v1296 = vsel %vm275, %v984, 0
    %1298 = vmatprep.subr.mxu0 0.0
    %1299 = vmatpush1.msra.mxu0 %v1293
    %1300 = vmatprep.subr.mxu0 0.0
    %1301 = vmatpush1.msra.mxu0 0.0
    %1302 = vmatprep.subr.mxu0 0.0
    %1303 = vmatpush1.msra.mxu0 0.0
    %1304 = vmatprep.subr.mxu0 0.0
    %1305 = vmatpush1.msra.mxu0 0.0
    %1306 = vmatprep.subr.mxu0 0.0
    %1307 = vmatpush1.msra.mxu0 0.0
    %1308 = vmatprep.subr.mxu0 0.0
    %1309 = vmatpush1.msra.mxu0 0.0
    %1310 = vmatprep.subr.mxu0 0.0
    %1311 = vmatpush1.msra.mxu0 0.0
    %1312 = vmatprep.subr.mxu0 0.0
    %1313 = vmatpush1.msra.mxu0 0.0
    %1314 = vmatprep.subr.mxu0 0.0
    %1315 = vmatpush1.msra.mxu0 0.0
    %1316 = vmatprep.subr.mxu0 0.0
    %1317 = vmatpush1.msra.mxu0 0.0
    %1318 = vmatprep.subr.mxu0 0.0
    %1319 = vmatpush1.msra.mxu0 0.0
    %1320 = vmatprep.subr.mxu0 0.0
    %1321 = vmatpush1.msra.mxu0 0.0
    %1322 = vmatprep.subr.mxu0 0.0
    %1323 = vmatpush1.msra.mxu0 0.0
    %1324 = vmatprep.subr.mxu0 0.0
    %1325 = vmatpush1.msra.mxu0 0.0
    %1326 = vmatprep.subr.mxu0 0.0
    %1327 = vmatpush1.msra.mxu0 0.0
    %1328 = vmatprep.subr.mxu0 0.0
    %1329 = vmatpush1.msra.mxu0 0.0
    %1330 = vmatprep.subr.mxu0 0.0
    %1331 = vmatpush1.msra.mxu0 0.0
    %1332 = vmatprep.subr.mxu0 0.0
    %1333 = vmatpush1.msra.mxu0 0.0
    %1334 = vmatprep.subr.mxu0 0.0
    %1335 = vmatpush1.msra.mxu0 0.0
    %1336 = vmatprep.subr.mxu0 0.0
    %1337 = vmatpush1.msra.mxu0 0.0
    %1338 = vmatprep.subr.mxu0 0.0
    %1339 = vmatpush1.msra.mxu0 0.0
    %1340 = vmatprep.subr.mxu0 0.0
    %1341 = vmatpush1.msra.mxu0 0.0
    %1342 = vmatprep.subr.mxu0 0.0
    %1343 = vmatpush1.msra.mxu0 0.0
    %1344 = vmatprep.subr.mxu0 0.0
    %1345 = vmatpush1.msra.mxu0 0.0
    %1346 = vmatprep.subr.mxu0 0.0
    %1347 = vmatpush1.msra.mxu0 0.0
    %1348 = vmatprep.subr.mxu0 0.0
    %1349 = vmatpush1.msra.mxu0 0.0
    %1350 = vmatprep.subr.mxu0 0.0
    %1351 = vmatpush1.msra.mxu0 0.0
    %1352 = vmatprep.subr.mxu0 0.0
    %1353 = vmatpush1.msra.mxu0 0.0
    %1354 = vmatprep.subr.mxu0 0.0
    %1355 = vmatpush1.msra.mxu0 0.0
    %1356 = vmatprep.subr.mxu0 0.0
    %1357 = vmatpush1.msra.mxu0 0.0
    %1358 = vmatprep.subr.mxu0 0.0
    %1359 = vmatpush1.msra.mxu0 0.0
    %1360 = vmatprep.subr.mxu0 0.0
    %1361 = vmatpush1.msra.mxu0 0.0
    %1362 = vmatprep.mubr.f32.mxu0 0.0
    %1363 = vmatmul.mubr.f32.gmra.mrb[0].mxu0 %v1296
    %v1364 = vpop.f32.mrb[0].mxu0
    %v1365 = vadd.f32 0.0, %v1364
    %v1366 = vpop.f32.mrb[0].mxu0
    %1367 = vdwg.mxu0
    %1368 = vrot.lane.b32.xlu0 %v270, 96
    %v1369 = vpop.permute.xlu0 %1368
    %v1372 = vsel %vm275, %v985, 0
    %1374 = vmatprep.subr.mxu0 0.0
    %1375 = vmatpush1.msra.mxu0 %v1369
    %1376 = vmatprep.subr.mxu0 0.0
    %1377 = vmatpush1.msra.mxu0 0.0
    %1378 = vmatprep.subr.mxu0 0.0
    %1379 = vmatpush1.msra.mxu0 0.0
    %1380 = vmatprep.subr.mxu0 0.0
    %1381 = vmatpush1.msra.mxu0 0.0
    %1382 = vmatprep.subr.mxu0 0.0
    %1383 = vmatpush1.msra.mxu0 0.0
    %1384 = vmatprep.subr.mxu0 0.0
    %1385 = vmatpush1.msra.mxu0 0.0
    %1386 = vmatprep.subr.mxu0 0.0
    %1387 = vmatpush1.msra.mxu0 0.0
    %1388 = vmatprep.subr.mxu0 0.0
    %1389 = vmatpush1.msra.mxu0 0.0
    %1390 = vmatprep.subr.mxu0 0.0
    %1391 = vmatpush1.msra.mxu0 0.0
    %1392 = vmatprep.subr.mxu0 0.0
    %1393 = vmatpush1.msra.mxu0 0.0
    %1394 = vmatprep.subr.mxu0 0.0
    %1395 = vmatpush1.msra.mxu0 0.0
    %1396 = vmatprep.subr.mxu0 0.0
    %1397 = vmatpush1.msra.mxu0 0.0
    %1398 = vmatprep.subr.mxu0 0.0
    %1399 = vmatpush1.msra.mxu0 0.0
    %1400 = vmatprep.subr.mxu0 0.0
    %1401 = vmatpush1.msra.mxu0 0.0
    %1402 = vmatprep.subr.mxu0 0.0
    %1403 = vmatpush1.msra.mxu0 0.0
    %1404 = vmatprep.subr.mxu0 0.0
    %1405 = vmatpush1.msra.mxu0 0.0
    %1406 = vmatprep.subr.mxu0 0.0
    %1407 = vmatpush1.msra.mxu0 0.0
    %1408 = vmatprep.subr.mxu0 0.0
    %1409 = vmatpush1.msra.mxu0 0.0
    %1410 = vmatprep.subr.mxu0 0.0
    %1411 = vmatpush1.msra.mxu0 0.0
    %1412 = vmatprep.subr.mxu0 0.0
    %1413 = vmatpush1.msra.mxu0 0.0
    %1414 = vmatprep.subr.mxu0 0.0
    %1415 = vmatpush1.msra.mxu0 0.0
    %1416 = vmatprep.subr.mxu0 0.0
    %1417 = vmatpush1.msra.mxu0 0.0
    %1418 = vmatprep.subr.mxu0 0.0
    %1419 = vmatpush1.msra.mxu0 0.0
    %1420 = vmatprep.subr.mxu0 0.0
    %1421 = vmatpush1.msra.mxu0 0.0
    %1422 = vmatprep.subr.mxu0 0.0
    %1423 = vmatpush1.msra.mxu0 0.0
    %1424 = vmatprep.subr.mxu0 0.0
    %1425 = vmatpush1.msra.mxu0 0.0
    %1426 = vmatprep.subr.mxu0 0.0
    %1427 = vmatpush1.msra.mxu0 0.0
    %1428 = vmatprep.subr.mxu0 0.0
    %1429 = vmatpush1.msra.mxu0 0.0
    %1430 = vmatprep.subr.mxu0 0.0
    %1431 = vmatpush1.msra.mxu0 0.0
    %1432 = vmatprep.subr.mxu0 0.0
    %1433 = vmatpush1.msra.mxu0 0.0
    %1434 = vmatprep.subr.mxu0 0.0
    %1435 = vmatpush1.msra.mxu0 0.0
    %1436 = vmatprep.subr.mxu0 0.0
    %1437 = vmatpush1.msra.mxu0 0.0
    %1438 = vmatprep.mubr.f32.mxu0 0.0
    %1439 = vmatmul.mubr.f32.gmra.mrb[0].mxu0 %v1372
    %v1440 = vpop.f32.mrb[0].mxu0
    %v1441 = vadd.f32 0.0, %v1440
    %v1442 = vpop.f32.mrb[0].mxu0
    %1443 = vdwg.mxu0
    %1444 = vrot.lane.b32.xlu0 %v272, 96
    %v1445 = vpop.permute.xlu0 %1444
    %v1448 = vsel %vm275, %v986, 0
    %1450 = vmatprep.subr.mxu0 0.0
    %1451 = vmatpush1.msra.mxu0 %v1445
    %1452 = vmatprep.subr.mxu0 0.0
    %1453 = vmatpush1.msra.mxu0 0.0
    %1454 = vmatprep.subr.mxu0 0.0
    %1455 = vmatpush1.msra.mxu0 0.0
    %1456 = vmatprep.subr.mxu0 0.0
    %1457 = vmatpush1.msra.mxu0 0.0
    %1458 = vmatprep.subr.mxu0 0.0
    %1459 = vmatpush1.msra.mxu0 0.0
    %1460 = vmatprep.subr.mxu0 0.0
    %1461 = vmatpush1.msra.mxu0 0.0
    %1462 = vmatprep.subr.mxu0 0.0
    %1463 = vmatpush1.msra.mxu0 0.0
    %1464 = vmatprep.subr.mxu0 0.0
    %1465 = vmatpush1.msra.mxu0 0.0
    %1466 = vmatprep.subr.mxu0 0.0
    %1467 = vmatpush1.msra.mxu0 0.0
    %1468 = vmatprep.subr.mxu0 0.0
    %1469 = vmatpush1.msra.mxu0 0.0
    %1470 = vmatprep.subr.mxu0 0.0
    %1471 = vmatpush1.msra.mxu0 0.0
    %1472 = vmatprep.subr.mxu0 0.0
    %1473 = vmatpush1.msra.mxu0 0.0
    %1474 = vmatprep.subr.mxu0 0.0
    %1475 = vmatpush1.msra.mxu0 0.0
    %1476 = vmatprep.subr.mxu0 0.0
    %1477 = vmatpush1.msra.mxu0 0.0
    %1478 = vmatprep.subr.mxu0 0.0
    %1479 = vmatpush1.msra.mxu0 0.0
    %1480 = vmatprep.subr.mxu0 0.0
    %1481 = vmatpush1.msra.mxu0 0.0
    %1482 = vmatprep.subr.mxu0 0.0
    %1483 = vmatpush1.msra.mxu0 0.0
    %1484 = vmatprep.subr.mxu0 0.0
    %1485 = vmatpush1.msra.mxu0 0.0
    %1486 = vmatprep.subr.mxu0 0.0
    %1487 = vmatpush1.msra.mxu0 0.0
    %1488 = vmatprep.subr.mxu0 0.0
    %1489 = vmatpush1.msra.mxu0 0.0
    %1490 = vmatprep.subr.mxu0 0.0
    %1491 = vmatpush1.msra.mxu0 0.0
    %1492 = vmatprep.subr.mxu0 0.0
    %1493 = vmatpush1.msra.mxu0 0.0
    %1494 = vmatprep.subr.mxu0 0.0
    %1495 = vmatpush1.msra.mxu0 0.0
    %1496 = vmatprep.subr.mxu0 0.0
    %1497 = vmatpush1.msra.mxu0 0.0
    %1498 = vmatprep.subr.mxu0 0.0
    %1499 = vmatpush1.msra.mxu0 0.0
    %1500 = vmatprep.subr.mxu0 0.0
    %1501 = vmatpush1.msra.mxu0 0.0
    %1502 = vmatprep.subr.mxu0 0.0
    %1503 = vmatpush1.msra.mxu0 0.0
    %1504 = vmatprep.subr.mxu0 0.0
    %1505 = vmatpush1.msra.mxu0 0.0
    %1506 = vmatprep.subr.mxu0 0.0
    %1507 = vmatpush1.msra.mxu0 0.0
    %1508 = vmatprep.subr.mxu0 0.0
    %1509 = vmatpush1.msra.mxu0 0.0
    %1510 = vmatprep.subr.mxu0 0.0
    %1511 = vmatpush1.msra.mxu0 0.0
    %1512 = vmatprep.subr.mxu0 0.0
    %1513 = vmatpush1.msra.mxu0 0.0
    %1514 = vmatprep.mubr.f32.mxu0 0.0
    %1515 = vmatmul.mubr.f32.gmra.mrb[0].mxu0 %v1448
    %v1516 = vpop.f32.mrb[0].mxu0
    %v1517 = vadd.f32 0.0, %v1516
    %v1518 = vpop.f32.mrb[0].mxu0
    %1519 = vdwg.mxu0
    %1520 = vrot.lane.b32.xlu0 %v274, 96
    %v1521 = vpop.permute.xlu0 %1520
    %v1524 = vsel %vm275, %v987, 0
    %1526 = vmatprep.subr.mxu0 0.0
    %1527 = vmatpush1.msra.mxu0 %v1521
    %1528 = vmatprep.subr.mxu0 0.0
    %1529 = vmatpush1.msra.mxu0 0.0
    %1530 = vmatprep.subr.mxu0 0.0
    %1531 = vmatpush1.msra.mxu0 0.0
    %1532 = vmatprep.subr.mxu0 0.0
    %1533 = vmatpush1.msra.mxu0 0.0
    %1534 = vmatprep.subr.mxu0 0.0
    %1535 = vmatpush1.msra.mxu0 0.0
    %1536 = vmatprep.subr.mxu0 0.0
    %1537 = vmatpush1.msra.mxu0 0.0
    %1538 = vmatprep.subr.mxu0 0.0
    %1539 = vmatpush1.msra.mxu0 0.0
    %1540 = vmatprep.subr.mxu0 0.0
    %1541 = vmatpush1.msra.mxu0 0.0
    %1542 = vmatprep.subr.mxu0 0.0
    %1543 = vmatpush1.msra.mxu0 0.0
    %1544 = vmatprep.subr.mxu0 0.0
    %1545 = vmatpush1.msra.mxu0 0.0
    %1546 = vmatprep.subr.mxu0 0.0
    %1547 = vmatpush1.msra.mxu0 0.0
    %1548 = vmatprep.subr.mxu0 0.0
    %1549 = vmatpush1.msra.mxu0 0.0
    %1550 = vmatprep.subr.mxu0 0.0
    %1551 = vmatpush1.msra.mxu0 0.0
    %1552 = vmatprep.subr.mxu0 0.0
    %1553 = vmatpush1.msra.mxu0 0.0
    %1554 = vmatprep.subr.mxu0 0.0
    %1555 = vmatpush1.msra.mxu0 0.0
    %1556 = vmatprep.subr.mxu0 0.0
    %1557 = vmatpush1.msra.mxu0 0.0
    %1558 = vmatprep.subr.mxu0 0.0
    %1559 = vmatpush1.msra.mxu0 0.0
    %1560 = vmatprep.subr.mxu0 0.0
    %1561 = vmatpush1.msra.mxu0 0.0
    %1562 = vmatprep.subr.mxu0 0.0
    %1563 = vmatpush1.msra.mxu0 0.0
    %1564 = vmatprep.subr.mxu0 0.0
    %1565 = vmatpush1.msra.mxu0 0.0
    %1566 = vmatprep.subr.mxu0 0.0
    %1567 = vmatpush1.msra.mxu0 0.0
    %1568 = vmatprep.subr.mxu0 0.0
    %1569 = vmatpush1.msra.mxu0 0.0
    %1570 = vmatprep.subr.mxu0 0.0
    %1571 = vmatpush1.msra.mxu0 0.0
    %1572 = vmatprep.subr.mxu0 0.0
    %1573 = vmatpush1.msra.mxu0 0.0
    %1574 = vmatprep.subr.mxu0 0.0
    %1575 = vmatpush1.msra.mxu0 0.0
    %1576 = vmatprep.subr.mxu0 0.0
    %1577 = vmatpush1.msra.mxu0 0.0
    %1578 = vmatprep.subr.mxu0 0.0
    %1579 = vmatpush1.msra.mxu0 0.0
    %1580 = vmatprep.subr.mxu0 0.0
    %1581 = vmatpush1.msra.mxu0 0.0
    %1582 = vmatprep.subr.mxu0 0.0
    %1583 = vmatpush1.msra.mxu0 0.0
    %1584 = vmatprep.subr.mxu0 0.0
    %1585 = vmatpush1.msra.mxu0 0.0
    %1586 = vmatprep.subr.mxu0 0.0
    %1587 = vmatpush1.msra.mxu0 0.0
    %1588 = vmatprep.subr.mxu0 0.0
    %1589 = vmatpush1.msra.mxu0 0.0
    %1590 = vmatprep.mubr.f32.mxu0 0.0
    %1591 = vmatmul.mubr.f32.gmra.mrb[0].mxu0 %v1524
    %v1592 = vpop.f32.mrb[0].mxu0
    %v1593 = vadd.f32 0.0, %v1592
    %v1594 = vpop.f32.mrb[0].mxu0
    %1595 = vdwg.mxu0
    %1598 = vrot.lane.b32.xlu0 %v1213, 8
    %v1599 = vpop.permute.xlu0 %1598
    %1600 = vrot.lane.b32.xlu0 %v1289, 8
    %v1601 = vpop.permute.xlu0 %1600
    %1606 = vrot.lane.b32.xlu0 %v1365, 16
    %v1607 = vpop.permute.xlu0 %1606
    %1608 = vrot.lane.b32.xlu0 %v1441, 16
    %v1609 = vpop.permute.xlu0 %1608
    %1614 = vrot.lane.b32.xlu0 %v1517, 24
    %v1615 = vpop.permute.xlu0 %1614
    %1616 = vrot.lane.b32.xlu0 %v1593, 24
    %v1617 = vpop.permute.xlu0 %1616
    %v1620 = vsel %vm275, %v1061, %v1599
    %v1621 = vsel %vm275, %v1137, %v1601
    %v1622 = vsel %vm165, %v1620, %v1607
    %v1623 = vsel %vm165, %v1621, %v1609
    %vm1624 = vcmask 195584
    %v1625 = vsel %vm1624, %v1622, %v1615
    %v1626 = vsel %vm1624, %v1623, %v1617
    %1627 = vst.msk [vmem:[#allocation10] sm:$0xff] %vm81, %v1625
    %1628 = vst.msk [vmem:[#allocation10 + $0x8] sm:$0xff] %vm81, %v1626
    // Predicated region
    $region34: #{tpu_custom_call.1} parent=1 // pred_check
      _
    $region35: #{tpu_custom_call.1} parent=1 // pred_check_branch
      %1630 = sbr.rel (0) target = $region37
    $region36: #{tpu_custom_call.1} parent=1 // pred_region
      %s1632 = ssub.s32 256, 256
      %1633 = vsyncadd [#allocation4], %s1632
      %s1634 = sshll.u32 [#allocation10], 4
      %s1635 = int_to_ptr.vmem [resolvable:$true] %s1634
      %1640 = dma.vmem_to_hbm [thread:$0]  %s1635, 256, %s4, [#allocation4], 128, 128, 8
    $region37: #{tpu_custom_call.1} parent=1 // pred_fallthru
      _
    // Predicated region
    $region38: #{tpu_custom_call.1} parent=1 // pred_check
      _
    $region39: #{tpu_custom_call.1} parent=1 // pred_check_branch
      %1642 = sbr.rel (0) target = $region41
    $region40: #{tpu_custom_call.1} parent=1 // pred_region
      %1643 = dma.done [#allocation4], 256
    $region41: #{tpu_custom_call.1} parent=1 // pred_fallthru
      _
    %1644 = vsyncpa [#allocation3], 1
    %1645 = vsyncpa [#allocation6], 1
    %1646 = vsyncpa [#allocation9], 1
    %1647 = vsyncpa [#allocation4], 1

</llo_original>
